<compile_context>
chip_gen: v5e
topology: v5e:2x2
jax: 0.10.0
libtpu: 0.0.40
codegen_flags: <defaults>
</compile_context>

<pallas_src>
import functools
import math

import jax
import jax.numpy as jnp
from jax import lax
from jax.experimental import pallas as pl
from jax.experimental.pallas import tpu as pltpu


def _pos_embed_kernel(y_coef_ref, x_coef_ref, phase_ref, o_ref, *,
                      tile_h, y_mul, x_mul):
    """Writes one (tile_h, W, C) block of the (H, W, C) positional embedding."""
    i = pl.program_id(0)
    _, W, C = o_ref.shape

    # x / w contribution + per-channel cos phase: varies along sublanes (W),
    # channel coef/phase along lanes (C).  Computed once per grid step.
    w_idx = lax.broadcasted_iota(jnp.int32, (W, C), 0)
    x_part = ((w_idx + 1).astype(jnp.float32) * jnp.float32(x_mul)
              * x_coef_ref[...] + phase_ref[...])          # (W, C)

    y_coef = y_coef_ref[...]                               # (1, C)

    # Short trace-time-unrolled loop over the rows of this tile; each row's y
    # contribution is a scalar, so all vector math stays in 2-D (W, C) vregs.
    # One sin per element (cos folded in via the phase table).
    for r in range(tile_h):
        y_val = (i * tile_h + r + 1).astype(jnp.float32) * jnp.float32(y_mul)
        o_ref[r] = jnp.sin(y_val * y_coef + x_part)        # (W, C)


def _pick_tile_h(H, max_tile=8):
    """Largest divisor of H that is <= max_tile (keeps the unrolled row loop short)."""
    for th in range(min(H, max_tile), 0, -1):
        if H % th == 0:
            return th
    return 1


def position_embedding_sine(tensor, feature_size, num_pos_feats=128,
                            temperature=10000.0, normalize=False, scale=None,
                            tile_h=None):
    """Pallas equivalent of PositionEmbeddingSine.forward.

    `tensor` is only used for device placement in the PyTorch module; its
    values do not affect the result.  Returns (H*W, 2*num_pos_feats) float32.
    """
    del tensor  # values unused; device placement handled by JAX's default device
    H, W = int(feature_size[0]), int(feature_size[1])
    P = int(num_pos_feats)
    C = 2 * P
    assert P % 2 == 0, "num_pos_feats must be even"
    if scale is not None and normalize is False:
        raise ValueError("normalize should be True if scale is passed")
    if scale is None:
        scale = 2 * math.pi

    eps = 1e-6
    y_mul = float(scale) / (H + eps) if normalize else 1.0
    x_mul = float(scale) / (W + eps) if normalize else 1.0

    # Per-channel tables, computed once (cheap; keeps the transcendental pow,
    # even/odd, and y/x channel logic out of the per-element kernel path).
    d = jnp.arange(P, dtype=jnp.float32)
    dim_t = jnp.float32(temperature) ** (2.0 * jnp.floor(d / 2.0) / P)
    inv_t = 1.0 / dim_t                                         # (P,)
    zeros = jnp.zeros((P,), jnp.float32)
    y_coef = jnp.concatenate([inv_t, zeros]).reshape(1, C)      # y half active
    x_coef = jnp.concatenate([zeros, inv_t]).reshape(1, C)      # x half active
    # even channel -> sin (phase 0); odd channel -> cos == sin(x + pi/2).
    phase_half = (jnp.arange(P) % 2).astype(jnp.float32) * jnp.float32(math.pi / 2.0)
    phase = jnp.concatenate([phase_half, phase_half]).reshape(1, C)

    if tile_h is None:
        tile_h = _pick_tile_h(H)
    assert H % tile_h == 0, "tile_h must divide feature_size[0]"

    kernel = functools.partial(_pos_embed_kernel, tile_h=tile_h,
                               y_mul=y_mul, x_mul=x_mul)
    out = pl.pallas_call(
        kernel,
        out_shape=jax.ShapeDtypeStruct((H, W, C), jnp.float32),
        grid=(H // tile_h,),
        in_specs=[
            pl.BlockSpec((1, C), lambda i: (0, 0)),   # y_coef (constant index)
            pl.BlockSpec((1, C), lambda i: (0, 0)),   # x_coef (constant index)
            pl.BlockSpec((1, C), lambda i: (0, 0)),   # cos phase per channel
        ],
        out_specs=pl.BlockSpec((tile_h, W, C), lambda i: (i, 0, 0)),
        compiler_params=pltpu.CompilerParams(
            dimension_semantics=("parallel",)),
        cost_estimate=pl.CostEstimate(
            flops=3 * H * W * C,
            transcendentals=H * W * C,
            bytes_accessed=H * W * C * 4 + 3 * C * 4,
        ),
    )(y_coef, x_coef, phase)
    return out.reshape(H * W, C)


def position_embedding_sine_ref(feature_size, num_pos_feats=128,
                                temperature=10000.0, normalize=False, scale=None):
    """Pure-jnp mirror of the PyTorch forward, for correctness checking."""
    H, W = feature_size
    if scale is None:
        scale = 2 * math.pi
    not_mask = jnp.ones((H, W), jnp.float32)
    y_embed = jnp.cumsum(not_mask, axis=0)
    x_embed = jnp.cumsum(not_mask, axis=1)
    if normalize:
        eps = 1e-6
        y_embed = y_embed / (y_embed[-1:, :] + eps) * scale
        x_embed = x_embed / (x_embed[:, -1:] + eps) * scale
    dim_t = jnp.arange(num_pos_feats, dtype=jnp.float32)
    dim_t = temperature ** (2 * jnp.floor(dim_t / 2) / num_pos_feats)
    pos_x = x_embed[:, :, None] / dim_t
    pos_y = y_embed[:, :, None] / dim_t
    pos_x = jnp.stack((jnp.sin(pos_x[:, :, 0::2]), jnp.cos(pos_x[:, :, 1::2])),
                      axis=3).reshape(H, W, num_pos_feats)
    pos_y = jnp.stack((jnp.sin(pos_y[:, :, 0::2]), jnp.cos(pos_y[:, :, 1::2])),
                      axis=3).reshape(H, W, num_pos_feats)
    pos = jnp.concatenate((pos_y, pos_x), axis=2).reshape(H * W, 2 * num_pos_feats)
    return pos


if __name__ == "__main__":
    feature_size = (16, 16)   # spatial H, W
    num_pos_feats = 64        # -> 2*P = 128 output channels (lane-dense)
    key = jax.random.PRNGKey(0)
    # The module only uses `tensor` for device placement; give it a plausible
    # small feature-map shape (batch=2, channels=4, 16x16 spatial).
    tensor = jax.random.normal(key, (2, 4, 16, 16), dtype=jnp.float32)

    pos = position_embedding_sine(tensor, feature_size,
                                  num_pos_feats=num_pos_feats,
                                  temperature=10000, normalize=False)
    pos = jax.block_until_ready(pos)
    assert pos.shape == (feature_size[0] * feature_size[1], 2 * num_pos_feats)

    ref = position_embedding_sine_ref(feature_size, num_pos_feats=num_pos_feats,
                                      temperature=10000, normalize=False)
    assert jnp.allclose(pos, ref, atol=1e-5, rtol=1e-5), "mismatch (normalize=False)"

    # Also exercise the normalize=True branch of the module.
    pos_n = position_embedding_sine(tensor, feature_size,
                                    num_pos_feats=num_pos_feats,
                                    temperature=10000, normalize=True)
    pos_n = jax.block_until_ready(pos_n)
    ref_n = position_embedding_sine_ref(feature_size, num_pos_feats=num_pos_feats,
                                        temperature=10000, normalize=True)
    assert jnp.allclose(pos_n, ref_n, atol=1e-5, rtol=1e-5), "mismatch (normalize=True)"

    print("KERNEL_OK")
</pallas_src>

<mosaic_0001>
module attributes {stable_mosaic.version = 11 : i64} {
  func.func @_pos_embed_kernel(%arg0: i32, %arg1: memref<1x128xf32, #tpu.memory_space<vmem>>, %arg2: memref<1x128xf32, #tpu.memory_space<vmem>>, %arg3: memref<1x128xf32, #tpu.memory_space<vmem>>, %arg4: memref<8x16x128xf32, #tpu.memory_space<vmem>>) attributes {dimension_semantics = [#tpu.dimension_semantics<parallel>], iteration_bounds = array<i64: 2>, scalar_prefetch = 0 : i64, scratch_operands = 0 : i64, tpu.core_type = #tpu.core_type<tc>, window_params = [{pipeline_mode = #tpu.pipeline_mode<synchronous>, transform_indices = @transform_0, window_bounds = array<i64: 1, 128>}, {pipeline_mode = #tpu.pipeline_mode<synchronous>, transform_indices = @transform_1, window_bounds = array<i64: 1, 128>}, {pipeline_mode = #tpu.pipeline_mode<synchronous>, transform_indices = @transform_2, window_bounds = array<i64: 1, 128>}, {transform_indices = @transform_3, window_bounds = array<i64: 8, 16, 128>}]} {
    %0 = tpu.iota {dimensions = array<i32: 0>} : vector<16x128xi32>
    %c1_i32 = arith.constant 1 : i32
    %1 = vector.broadcast %c1_i32 : i32 to vector<16x128xi32>
    %2 = arith.addi %0, %1 : vector<16x128xi32>
    %3 = arith.sitofp %2 : vector<16x128xi32> to vector<16x128xf32>
    %cst = arith.constant 1.000000e+00 : f32
    %4 = vector.broadcast %cst : f32 to vector<16x128xf32>
    %5 = arith.mulf %3, %4 : vector<16x128xf32>
    %c0 = arith.constant 0 : index
    %c0_0 = arith.constant 0 : index
    %6 = vector.load %arg2[%c0, %c0_0] : memref<1x128xf32, #tpu.memory_space<vmem>>, vector<1x128xf32>
    %7 = vector.broadcast %6 : vector<1x128xf32> to vector<16x128xf32>
    %8 = arith.mulf %5, %7 : vector<16x128xf32>
    %c0_1 = arith.constant 0 : index
    %c0_2 = arith.constant 0 : index
    %9 = vector.load %arg3[%c0_1, %c0_2] : memref<1x128xf32, #tpu.memory_space<vmem>>, vector<1x128xf32>
    %10 = vector.broadcast %9 : vector<1x128xf32> to vector<16x128xf32>
    %11 = arith.addf %8, %10 : vector<16x128xf32>
    %c0_3 = arith.constant 0 : index
    %c0_4 = arith.constant 0 : index
    %12 = vector.load %arg1[%c0_3, %c0_4] : memref<1x128xf32, #tpu.memory_space<vmem>>, vector<1x128xf32>
    %c8_i32 = arith.constant 8 : i32
    %13 = arith.muli %arg0, %c8_i32 : i32
    %c0_i32 = arith.constant 0 : i32
    %14 = arith.addi %13, %c0_i32 : i32
    %c1_i32_5 = arith.constant 1 : i32
    %15 = arith.addi %14, %c1_i32_5 : i32
    %16 = arith.sitofp %15 : i32 to f32
    %cst_6 = arith.constant 1.000000e+00 : f32
    %17 = arith.mulf %16, %cst_6 : f32
    %18 = vector.broadcast %17 : f32 to vector<1x128xf32>
    %19 = arith.mulf %18, %12 : vector<1x128xf32>
    %20 = vector.broadcast %19 : vector<1x128xf32> to vector<16x128xf32>
    %21 = arith.addf %20, %11 : vector<16x128xf32>
    %22 = math.sin %21 : vector<16x128xf32>
    %c0_7 = arith.constant 0 : index
    %c0_8 = arith.constant 0 : index
    %c0_9 = arith.constant 0 : index
    %23 = vector.load %arg4[%c0_7, %c0_8, %c0_9] : memref<8x16x128xf32, #tpu.memory_space<vmem>>, vector<1x16x128xf32>
    %24 = vector.shape_cast %23 : vector<1x16x128xf32> to vector<16x128xf32>
    %25 = vector.shape_cast %22 : vector<16x128xf32> to vector<1x16x128xf32>
    tpu.vector_store %arg4[%c0_7, %c0_8, %c0_9], %25 {strides = array<i32>} : memref<8x16x128xf32, #tpu.memory_space<vmem>>, vector<1x16x128xf32>,
    %c8_i32_10 = arith.constant 8 : i32
    %26 = arith.muli %arg0, %c8_i32_10 : i32
    %c1_i32_11 = arith.constant 1 : i32
    %27 = arith.addi %26, %c1_i32_11 : i32
    %c1_i32_12 = arith.constant 1 : i32
    %28 = arith.addi %27, %c1_i32_12 : i32
    %29 = arith.sitofp %28 : i32 to f32
    %cst_13 = arith.constant 1.000000e+00 : f32
    %30 = arith.mulf %29, %cst_13 : f32
    %31 = vector.broadcast %30 : f32 to vector<1x128xf32>
    %32 = arith.mulf %31, %12 : vector<1x128xf32>
    %33 = vector.broadcast %32 : vector<1x128xf32> to vector<16x128xf32>
    %34 = arith.addf %33, %11 : vector<16x128xf32>
    %35 = math.sin %34 : vector<16x128xf32>
    %c1 = arith.constant 1 : index
    %c0_14 = arith.constant 0 : index
    %c0_15 = arith.constant 0 : index
    %36 = vector.load %arg4[%c1, %c0_14, %c0_15] : memref<8x16x128xf32, #tpu.memory_space<vmem>>, vector<1x16x128xf32>
    %37 = vector.shape_cast %36 : vector<1x16x128xf32> to vector<16x128xf32>
    %38 = vector.shape_cast %35 : vector<16x128xf32> to vector<1x16x128xf32>
    tpu.vector_store %arg4[%c1, %c0_14, %c0_15], %38 {strides = array<i32>} : memref<8x16x128xf32, #tpu.memory_space<vmem>>, vector<1x16x128xf32>,
    %c8_i32_16 = arith.constant 8 : i32
    %39 = arith.muli %arg0, %c8_i32_16 : i32
    %c2_i32 = arith.constant 2 : i32
    %40 = arith.addi %39, %c2_i32 : i32
    %c1_i32_17 = arith.constant 1 : i32
    %41 = arith.addi %40, %c1_i32_17 : i32
    %42 = arith.sitofp %41 : i32 to f32
    %cst_18 = arith.constant 1.000000e+00 : f32
    %43 = arith.mulf %42, %cst_18 : f32
    %44 = vector.broadcast %43 : f32 to vector<1x128xf32>
    %45 = arith.mulf %44, %12 : vector<1x128xf32>
    %46 = vector.broadcast %45 : vector<1x128xf32> to vector<16x128xf32>
    %47 = arith.addf %46, %11 : vector<16x128xf32>
    %48 = math.sin %47 : vector<16x128xf32>
    %c2 = arith.constant 2 : index
    %c0_19 = arith.constant 0 : index
    %c0_20 = arith.constant 0 : index
    %49 = vector.load %arg4[%c2, %c0_19, %c0_20] : memref<8x16x128xf32, #tpu.memory_space<vmem>>, vector<1x16x128xf32>
    %50 = vector.shape_cast %49 : vector<1x16x128xf32> to vector<16x128xf32>
    %51 = vector.shape_cast %48 : vector<16x128xf32> to vector<1x16x128xf32>
    tpu.vector_store %arg4[%c2, %c0_19, %c0_20], %51 {strides = array<i32>} : memref<8x16x128xf32, #tpu.memory_space<vmem>>, vector<1x16x128xf32>,
    %c8_i32_21 = arith.constant 8 : i32
    %52 = arith.muli %arg0, %c8_i32_21 : i32
    %c3_i32 = arith.constant 3 : i32
    %53 = arith.addi %52, %c3_i32 : i32
    %c1_i32_22 = arith.constant 1 : i32
    %54 = arith.addi %53, %c1_i32_22 : i32
    %55 = arith.sitofp %54 : i32 to f32
    %cst_23 = arith.constant 1.000000e+00 : f32
    %56 = arith.mulf %55, %cst_23 : f32
    %57 = vector.broadcast %56 : f32 to vector<1x128xf32>
    %58 = arith.mulf %57, %12 : vector<1x128xf32>
    %59 = vector.broadcast %58 : vector<1x128xf32> to vector<16x128xf32>
    %60 = arith.addf %59, %11 : vector<16x128xf32>
    %61 = math.sin %60 : vector<16x128xf32>
    %c3 = arith.constant 3 : index
    %c0_24 = arith.constant 0 : index
    %c0_25 = arith.constant 0 : index
    %62 = vector.load %arg4[%c3, %c0_24, %c0_25] : memref<8x16x128xf32, #tpu.memory_space<vmem>>, vector<1x16x128xf32>
    %63 = vector.shape_cast %62 : vector<1x16x128xf32> to vector<16x128xf32>
    %64 = vector.shape_cast %61 : vector<16x128xf32> to vector<1x16x128xf32>
    tpu.vector_store %arg4[%c3, %c0_24, %c0_25], %64 {strides = array<i32>} : memref<8x16x128xf32, #tpu.memory_space<vmem>>, vector<1x16x128xf32>,
    %c8_i32_26 = arith.constant 8 : i32
    %65 = arith.muli %arg0, %c8_i32_26 : i32
    %c4_i32 = arith.constant 4 : i32
    %66 = arith.addi %65, %c4_i32 : i32
    %c1_i32_27 = arith.constant 1 : i32
    %67 = arith.addi %66, %c1_i32_27 : i32
    %68 = arith.sitofp %67 : i32 to f32
    %cst_28 = arith.constant 1.000000e+00 : f32
    %69 = arith.mulf %68, %cst_28 : f32
    %70 = vector.broadcast %69 : f32 to vector<1x128xf32>
    %71 = arith.mulf %70, %12 : vector<1x128xf32>
    %72 = vector.broadcast %71 : vector<1x128xf32> to vector<16x128xf32>
    %73 = arith.addf %72, %11 : vector<16x128xf32>
    %74 = math.sin %73 : vector<16x128xf32>
    %c4 = arith.constant 4 : index
    %c0_29 = arith.constant 0 : index
    %c0_30 = arith.constant 0 : index
    %75 = vector.load %arg4[%c4, %c0_29, %c0_30] : memref<8x16x128xf32, #tpu.memory_space<vmem>>, vector<1x16x128xf32>
    %76 = vector.shape_cast %75 : vector<1x16x128xf32> to vector<16x128xf32>
    %77 = vector.shape_cast %74 : vector<16x128xf32> to vector<1x16x128xf32>
    tpu.vector_store %arg4[%c4, %c0_29, %c0_30], %77 {strides = array<i32>} : memref<8x16x128xf32, #tpu.memory_space<vmem>>, vector<1x16x128xf32>,
    %c8_i32_31 = arith.constant 8 : i32
    %78 = arith.muli %arg0, %c8_i32_31 : i32
    %c5_i32 = arith.constant 5 : i32
    %79 = arith.addi %78, %c5_i32 : i32
    %c1_i32_32 = arith.constant 1 : i32
    %80 = arith.addi %79, %c1_i32_32 : i32
    %81 = arith.sitofp %80 : i32 to f32
    %cst_33 = arith.constant 1.000000e+00 : f32
    %82 = arith.mulf %81, %cst_33 : f32
    %83 = vector.broadcast %82 : f32 to vector<1x128xf32>
    %84 = arith.mulf %83, %12 : vector<1x128xf32>
    %85 = vector.broadcast %84 : vector<1x128xf32> to vector<16x128xf32>
    %86 = arith.addf %85, %11 : vector<16x128xf32>
    %87 = math.sin %86 : vector<16x128xf32>
    %c5 = arith.constant 5 : index
    %c0_34 = arith.constant 0 : index
    %c0_35 = arith.constant 0 : index
    %88 = vector.load %arg4[%c5, %c0_34, %c0_35] : memref<8x16x128xf32, #tpu.memory_space<vmem>>, vector<1x16x128xf32>
    %89 = vector.shape_cast %88 : vector<1x16x128xf32> to vector<16x128xf32>
    %90 = vector.shape_cast %87 : vector<16x128xf32> to vector<1x16x128xf32>
    tpu.vector_store %arg4[%c5, %c0_34, %c0_35], %90 {strides = array<i32>} : memref<8x16x128xf32, #tpu.memory_space<vmem>>, vector<1x16x128xf32>,
    %c8_i32_36 = arith.constant 8 : i32
    %91 = arith.muli %arg0, %c8_i32_36 : i32
    %c6_i32 = arith.constant 6 : i32
    %92 = arith.addi %91, %c6_i32 : i32
    %c1_i32_37 = arith.constant 1 : i32
    %93 = arith.addi %92, %c1_i32_37 : i32
    %94 = arith.sitofp %93 : i32 to f32
    %cst_38 = arith.constant 1.000000e+00 : f32
    %95 = arith.mulf %94, %cst_38 : f32
    %96 = vector.broadcast %95 : f32 to vector<1x128xf32>
    %97 = arith.mulf %96, %12 : vector<1x128xf32>
    %98 = vector.broadcast %97 : vector<1x128xf32> to vector<16x128xf32>
    %99 = arith.addf %98, %11 : vector<16x128xf32>
    %100 = math.sin %99 : vector<16x128xf32>
    %c6 = arith.constant 6 : index
    %c0_39 = arith.constant 0 : index
    %c0_40 = arith.constant 0 : index
    %101 = vector.load %arg4[%c6, %c0_39, %c0_40] : memref<8x16x128xf32, #tpu.memory_space<vmem>>, vector<1x16x128xf32>
    %102 = vector.shape_cast %101 : vector<1x16x128xf32> to vector<16x128xf32>
    %103 = vector.shape_cast %100 : vector<16x128xf32> to vector<1x16x128xf32>
    tpu.vector_store %arg4[%c6, %c0_39, %c0_40], %103 {strides = array<i32>} : memref<8x16x128xf32, #tpu.memory_space<vmem>>, vector<1x16x128xf32>,
    %c8_i32_41 = arith.constant 8 : i32
    %104 = arith.muli %arg0, %c8_i32_41 : i32
    %c7_i32 = arith.constant 7 : i32
    %105 = arith.addi %104, %c7_i32 : i32
    %c1_i32_42 = arith.constant 1 : i32
    %106 = arith.addi %105, %c1_i32_42 : i32
    %107 = arith.sitofp %106 : i32 to f32
    %cst_43 = arith.constant 1.000000e+00 : f32
    %108 = arith.mulf %107, %cst_43 : f32
    %109 = vector.broadcast %108 : f32 to vector<1x128xf32>
    %110 = arith.mulf %109, %12 : vector<1x128xf32>
    %111 = vector.broadcast %110 : vector<1x128xf32> to vector<16x128xf32>
    %112 = arith.addf %111, %11 : vector<16x128xf32>
    %113 = math.sin %112 : vector<16x128xf32>
    %c7 = arith.constant 7 : index
    %c0_44 = arith.constant 0 : index
    %c0_45 = arith.constant 0 : index
    %114 = vector.load %arg4[%c7, %c0_44, %c0_45] : memref<8x16x128xf32, #tpu.memory_space<vmem>>, vector<1x16x128xf32>
    %115 = vector.shape_cast %114 : vector<1x16x128xf32> to vector<16x128xf32>
    %116 = vector.shape_cast %113 : vector<16x128xf32> to vector<1x16x128xf32>
    tpu.vector_store %arg4[%c7, %c0_44, %c0_45], %116 {strides = array<i32>} : memref<8x16x128xf32, #tpu.memory_space<vmem>>, vector<1x16x128xf32>,
    return
  }
  func.func @transform_0(%arg0: i32) -> (i32, i32) {
    %c0_i32 = arith.constant 0 : i32
    %c0_i32_0 = arith.constant 0 : i32
    %c0_i32_1 = arith.constant 0 : i32
    return %c0_i32, %c0_i32_0 : i32, i32
  }
  func.func @transform_1(%arg0: i32) -> (i32, i32) {
    %c0_i32 = arith.constant 0 : i32
    %c0_i32_0 = arith.constant 0 : i32
    %c0_i32_1 = arith.constant 0 : i32
    return %c0_i32, %c0_i32_0 : i32, i32
  }
  func.func @transform_2(%arg0: i32) -> (i32, i32) {
    %c0_i32 = arith.constant 0 : i32
    %c0_i32_0 = arith.constant 0 : i32
    %c0_i32_1 = arith.constant 0 : i32
    return %c0_i32, %c0_i32_0 : i32, i32
  }
  func.func @transform_3(%arg0: i32) -> (i32, i32, i32) {
    %c0_i32 = arith.constant 0 : i32
    %c0_i32_0 = arith.constant 0 : i32
    %c0_i32_1 = arith.constant 0 : i32
    return %arg0, %c0_i32, %c0_i32_0 : i32, i32, i32
  }
}

</mosaic_0001>

<llo_original>
// kernel: tpu_custom_call.1
$region0: #{tpu_custom_call.1}
  #allocation0 [shape = 'u32[]', space=smem, size = 0x4, offset = 0x4, fixed_abs, tag = 'smem constant byte address 0x4 - core index']
  #allocation1 [shape = 'u32[72,128]{1,0:T(1,128)}', space=vmem, size = 0x9000, scoped, tag = 'internal scratch']
  %s0 = inlined_call_operand.hbm [shape: f32[1,128], index: 0, kind: input, shape index: {}]
  %s1 = inlined_call_operand.hbm [shape: f32[1,128], index: 1, kind: input, shape index: {}]
  %s2 = inlined_call_operand.vmem [shape: f32[1,128], index: 2, kind: input, shape index: {}]
  %s3 = inlined_call_operand.hbm [shape: f32[16,16,128], index: 3, kind: output, shape index: {}]
  %s4 = sld [smem:[#allocation0]]
  $region53: #{tpu_custom_call.1} parent=0
    _
  %s6 = ssub.s32 1, %s4
  %s7 = scalar_select 0, %s6, %s4
  $region1: #{tpu_custom_call.1} parent=0
    #allocation2 [shape = 'u8[512]{0}', space=vmem, size = 0x400, scoped, tag = 'input window, operand 0, single buffered']
    #allocation3 [shape = 's32[2]{0}', space=sflag, size = 0x8, scoped, tag = 'scoped memory for tpu_custom_call.1']
    #allocation4 [shape = 's32[2]{0}', space=sflag, size = 0x8, scoped, tag = 'scoped memory for tpu_custom_call.1']
    #allocation5 [shape = 'u8[512]{0}', space=vmem, size = 0x400, scoped, tag = 'input window, operand 1, single buffered']
    #allocation6 [shape = 's32[1]{0}', space=sflag, size = 0x4, scoped, tag = 'scoped memory for tpu_custom_call.1']
    #allocation7 [shape = 'u8[131072]{0}', space=vmem, size = 0x20000, scoped, tag = 'output window, operand 0']
    %8 = vsyncpa [#allocation3], 0
    %9 = vsyncpa [#allocation6], 0
    %10 = vsyncpa [#allocation4], 0
    %s11 = scalar_lea.sflag [#allocation4], 1
    %12 = vsyncpa %s11, 0
    loop: start=0, step=1, limit=4
    $region2: #{tpu_custom_call.1} parent=1 // loop_pre_header
      _
    $region3: #{tpu_custom_call.1} parent=1 // loop_header
      %s14 = sphi 0, %s18
      %p15 = scmp.ge.s32.totalorder %s14, 4
      %s22 = sphi 0, %s22
      %s24 = sphi 0, %s22
      %s25 = sphi 0, %s24
      %s39 = sphi 0, %s25
      %s43 = sphi 0, %s43
      %s45 = sphi 0, %s43
      %s46 = sphi 0, %s45
      %s60 = sphi 0, %s46
      %s64 = sphi 0, %s64
      %s66 = sphi 0, %s64
      %s67 = sphi 0, %s66
      %s81 = sphi 0, %s67
      %s87 = sphi 0, %s89
      %s90 = sphi 0, %s87
      %s91 = sphi 0, %s90
      %s107 = sphi 0, %s91
    $region4: #{tpu_custom_call.1} parent=1 // loop_header_branch
      %17 = sbr.rel (%p15) target = $region8
    $region5: #{tpu_custom_call.1} parent=1 // loop_body
      %s19 = ssub.s32 %s14, 1
      %s20 = ssub.s32 %s14, 2
      %s21 = sadd.s32 %s14, 1
      %s23 = sadd.s32 %s22, 1
      %p26 = scmp.eq.s32.totalorder %s14, 1
      %p27 = scmp.ne.s32.totalorder %s22, %s24
      %p28 = scmp.eq.s32.totalorder %s14, 0
      %p29 = por %p27, %p28
      %p30 = scmp.ne.s32.totalorder %s22, %s24
      %p31 = scmp.eq.s32.totalorder %s19, 1
      %p32 = por %p30, %p31
      %p33 = scmp.ne.s32.totalorder %s24, %s25
      %p34 = scmp.eq.s32.totalorder %s19, 0
      %p35 = por %p33, %p34
      %p36 = scmp.ne.s32.totalorder %s24, %s25
      %p37 = scmp.eq.s32.totalorder %s20, 1
      %p38 = por %p36, %p37
      %p40 = scmp.ne.s32.totalorder %s25, %s39
      %p41 = scmp.eq.s32.totalorder %s20, 0
      %p42 = por %p40, %p41
      %s44 = sadd.s32 %s43, 1
      %p47 = scmp.eq.s32.totalorder %s14, 1
      %p48 = scmp.ne.s32.totalorder %s43, %s45
      %p49 = scmp.eq.s32.totalorder %s14, 0
      %p50 = por %p48, %p49
      %p51 = scmp.ne.s32.totalorder %s43, %s45
      %p52 = scmp.eq.s32.totalorder %s19, 1
      %p53 = por %p51, %p52
      %p54 = scmp.ne.s32.totalorder %s45, %s46
      %p55 = scmp.eq.s32.totalorder %s19, 0
      %p56 = por %p54, %p55
      %p57 = scmp.ne.s32.totalorder %s45, %s46
      %p58 = scmp.eq.s32.totalorder %s20, 1
      %p59 = por %p57, %p58
      %p61 = scmp.ne.s32.totalorder %s46, %s60
      %p62 = scmp.eq.s32.totalorder %s20, 0
      %p63 = por %p61, %p62
      %s65 = sadd.s32 %s64, 1
      %p68 = scmp.eq.s32.totalorder %s14, 1
      %p69 = scmp.ne.s32.totalorder %s64, %s66
      %p70 = scmp.eq.s32.totalorder %s14, 0
      %p71 = por %p69, %p70
      %p72 = scmp.ne.s32.totalorder %s64, %s66
      %p73 = scmp.eq.s32.totalorder %s19, 1
      %p74 = por %p72, %p73
      %p75 = scmp.ne.s32.totalorder %s66, %s67
      %p76 = scmp.eq.s32.totalorder %s19, 0
      %p77 = por %p75, %p76
      %p78 = scmp.ne.s32.totalorder %s66, %s67
      %p79 = scmp.eq.s32.totalorder %s20, 1
      %p80 = por %p78, %p79
      %p82 = scmp.ne.s32.totalorder %s67, %s81
      %p83 = scmp.eq.s32.totalorder %s20, 0
      %p84 = por %p82, %p83
      %s85 = ssub.s32 %s14, %s21
      %p86 = scmp.eq.s32.totalorder %s85, 0
      %s88 = sadd.s32 %s87, 1
      %s89 = scalar_select %p86, %s87, %s88
      %p92 = pneg %p86
      %p93 = scmp.eq.s32.totalorder %s14, 1
      %p94 = por %p92, %p93
      %p95 = scmp.ne.s32.totalorder %s87, %s90
      %p96 = scmp.eq.s32.totalorder %s14, 0
      %p97 = por %p95, %p96
      %p98 = scmp.ne.s32.totalorder %s87, %s90
      %p99 = scmp.eq.s32.totalorder %s19, 1
      %p100 = por %p98, %p99
      %p101 = scmp.ne.s32.totalorder %s90, %s91
      %p102 = scmp.eq.s32.totalorder %s19, 0
      %p103 = por %p101, %p102
      %p104 = scmp.ne.s32.totalorder %s90, %s91
      %p105 = scmp.eq.s32.totalorder %s20, 1
      %p106 = por %p104, %p105
      %p108 = scmp.ne.s32.totalorder %s91, %s107
      %p109 = scmp.eq.s32.totalorder %s20, 0
      %p110 = por %p108, %p109
      %p111 = scmp.le.s32.totalorder 1, %s14
      %p112 = scmp.lt.s32.totalorder %s14, 3
      %p113 = pnand %p111, %p112
      %p114 = pneg %p113
      // Predicated region
      $region9: #{tpu_custom_call.1} parent=5 // pred_check
        _
      $region10: #{tpu_custom_call.1} parent=5 // pred_check_branch
        %116 = sbr.rel (%p113) target = $region12
      $region11: #{tpu_custom_call.1} parent=5 // pred_region
        %s117 = ssub.s32 %s14, 1
        // Predicated region
        $region13: #{tpu_custom_call.1} parent=11 // pred_check
          %p118 = pneg %p35
        $region14: #{tpu_custom_call.1} parent=11 // pred_check_branch
          %120 = sbr.rel (%p118) target = $region16
        $region15: #{tpu_custom_call.1} parent=11 // pred_region
          %122 = vsyncadd [#allocation3], 0
          %s124 = sshll.u32 %s0, 4
          %s125 = int_to_ptr.hbm [resolvable:$true] %s124
          %s126 = sshll.u32 [#allocation2], 4
          %s127 = int_to_ptr.vmem [resolvable:$true] %s126
          %129 = dma.hbm_to_vmem [thread:$0]  %s125, 16, %s127, [#allocation3]
        $region16: #{tpu_custom_call.1} parent=11 // pred_fallthru
          _
        // Predicated region
        $region17: #{tpu_custom_call.1} parent=11 // pred_check
          %p130 = pneg %p56
        $region18: #{tpu_custom_call.1} parent=11 // pred_check_branch
          %132 = sbr.rel (%p130) target = $region20
        $region19: #{tpu_custom_call.1} parent=11 // pred_region
          %134 = vsyncadd [#allocation6], 0
          %s136 = sshll.u32 %s1, 4
          %s137 = int_to_ptr.hbm [resolvable:$true] %s136
          %s138 = sshll.u32 [#allocation5], 4
          %s139 = int_to_ptr.vmem [resolvable:$true] %s138
          %141 = dma.hbm_to_vmem [thread:$0]  %s137, 16, %s139, [#allocation6]
        $region20: #{tpu_custom_call.1} parent=11 // pred_fallthru
          _
        // Predicated region
        $region21: #{tpu_custom_call.1} parent=11 // pred_check
          %p142 = pneg %p77
        $region22: #{tpu_custom_call.1} parent=11 // pred_check_branch
          %144 = sbr.rel (%p142) target = $region24
        $region23: #{tpu_custom_call.1} parent=11 // pred_region
          _
        $region24: #{tpu_custom_call.1} parent=11 // pred_fallthru
          _
      $region12: #{tpu_custom_call.1} parent=5 // pred_fallthru
        _
      %p145 = scmp.lt.s32.totalorder %s14, 2
      // Predicated region
      $region25: #{tpu_custom_call.1} parent=5 // pred_check
        %p146 = pneg %p145
      $region26: #{tpu_custom_call.1} parent=5 // pred_check_branch
        %148 = sbr.rel (%p146) target = $region28
      $region27: #{tpu_custom_call.1} parent=5 // pred_region
        _
      $region28: #{tpu_custom_call.1} parent=5 // pred_fallthru
        _
      %p149 = scmp.le.s32.totalorder 1, %s14
      %p150 = scmp.lt.s32.totalorder %s14, 3
      %p151 = pnand %p149, %p150
      %p152 = pneg %p151
      // Predicated region
      $region29: #{tpu_custom_call.1} parent=5 // pred_check
        _
      $region30: #{tpu_custom_call.1} parent=5 // pred_check_branch
        %154 = sbr.rel (%p151) target = $region32
      $region31: #{tpu_custom_call.1} parent=5 // pred_region
        %s155 = ssub.s32 %s14, 1
        // Predicated region
        $region33: #{tpu_custom_call.1} parent=31 // pred_check
          %p156 = pneg %p35
        $region34: #{tpu_custom_call.1} parent=31 // pred_check_branch
          %158 = sbr.rel (%p156) target = $region36
        $region35: #{tpu_custom_call.1} parent=31 // pred_region
          %160 = dma.done [#allocation3], 16
        $region36: #{tpu_custom_call.1} parent=31 // pred_fallthru
          _
        // Predicated region
        $region37: #{tpu_custom_call.1} parent=31 // pred_check
          %p161 = pneg %p56
        $region38: #{tpu_custom_call.1} parent=31 // pred_check_branch
          %163 = sbr.rel (%p161) target = $region40
        $region39: #{tpu_custom_call.1} parent=31 // pred_region
          %165 = dma.done [#allocation6], 16
        $region40: #{tpu_custom_call.1} parent=31 // pred_fallthru
          _
        %p166 = pneg %p35
        %p167 = pneg %p32
        %p168 = pneg %p56
        %p169 = pneg %p53
        %p170 = pneg %p77
        %p171 = pneg %p74
        %p172 = pneg %p103
        %p173 = pneg %p100
        %s174 = sand.u32 %s90, 1
        %s175 = scalar_lea.sflag [#allocation4], %s174
        %s176 = sand.u32 %s90, 1
        %s177 = smul.addr %s176, 128
        %s178 = scalar_lea.vmem [#allocation7], %s177
        %s179 = smul.u32 8, %s19
        %v180 = vlaneseq
        %v181 = vshrl.u32 %v180, 7
        %v182 = vadd.s32 %v181, 8
        %v183 = vadd.s32 %v181, 1
        %v184 = vadd.s32 %v182, 1
        %v185 = vcvt.s32.f32 %v183
        %v186 = vcvt.s32.f32 %v184
        %v187 = vld [vmem:[#allocation5] sm:$0x1]
        %v189 = vperm.slane %v187, 0
        %v191 = vmul.f32 %v185, %v189
        %v192 = vmul.f32 %v186, %v189
        %v193 = vld [vmem:[%s2] sm:$0x1]
        %v195 = vperm.slane %v193, 0
        %v197 = vadd.f32 %v191, %v195
        %v198 = vadd.f32 %v192, %v195
        %v199 = vld [vmem:[#allocation2] sm:$0x1]
        %s200 = smul.u32 %s19, 8
        %s201 = sadd.s32 %s200, 1
        %s202 = scvt.s32.f32 %s201
        %v203 = vstv %s202
        %v204 = vmul.f32 %v203, %v199
        %v206 = vperm.slane %v204, 0
        %v208 = vadd.f32 %v206, %v197
        %v209 = vadd.f32 %v206, %v198
        %v210 = vand.u32 2147483647, %v208
        %vm211 = vcmp.le.f32.partialorder %v210, 0.7853982
        %vm212 = vcmp.lt.s32.totalorder %v208, 0
        %v213 = vand.u32 %v208, 2139095040
        %v214 = vshrl.u32 %v213, 23
        %v215 = vsub.s32 %v214, 127
        %v216 = vand.u32 2147483647, %v208
        %v217 = vand.u32 %v216, 8388607
        %v218 = vor.u32 %v217, 8388608
        %v219 = vsub.s32 0, %v218
        %v220 = vadd.s32 %v215, 1
        %vm221 = vcmp.gt.s32.totalorder %v220, 0
        %v222 = vsel %vm221, %v220, 0
        %v223 = vshrl.u32 %v222, 5
        %v224 = vand.u32 %v222, 31
        %v225 = vsub.s32 32, %v224
        %v226 = vshrl.u32 683565275, %v225
        %v227 = vshll.u32 683565275, %v224
        %v228 = vshrl.u32 2475754826, %v225
        %v229 = vor.u32 %v227, %v228
        %v230 = vshll.u32 2475754826, %v224
        %v231 = vshrl.u32 2131351028, %v225
        %v232 = vor.u32 %v230, %v231
        %v233 = vshll.u32 2131351028, %v224
        %v234 = vshrl.u32 2102212464, %v225
        %v235 = vor.u32 %v233, %v234
        %v236 = vshll.u32 2102212464, %v224
        %v237 = vshrl.u32 920167782, %v225
        %v238 = vor.u32 %v236, %v237
        %v239 = vshll.u32 920167782, %v224
        %v240 = vshrl.u32 1326507024, %v225
        %v241 = vor.u32 %v239, %v240
        %vm242 = vcmp.lt.s32.totalorder %v223, 1
        %vm243 = vcmp.lt.s32.totalorder %v223, 2
        %vm244 = vcmp.lt.s32.totalorder %v223, 3
        %vm245 = vcmp.lt.s32.totalorder %v223, 4
        %v246 = vsel %vm242, %v226, %v229
        %v247 = vsel %vm245, %v235, 2102212464
        %v248 = vsel %vm244, %v232, %v247
        %v249 = vsel %vm243, %v246, %v248
        %v250 = vsel %vm242, %v229, %v232
        %v251 = vsel %vm245, %v238, 920167782
        %v252 = vsel %vm244, %v235, %v251
        %v253 = vsel %vm243, %v250, %v252
        %v254 = vsel %vm242, %v232, %v235
        %v255 = vsel %vm245, %v241, 1326507024
        %v256 = vsel %vm244, %v238, %v255
        %v257 = vsel %vm243, %v254, %v256
        %v258 = vshll.u32 %v218, 8
        %v259 = vand.u32 %v258, 65535
        %v260 = vshrl.u32 %v258, 16
        %v261 = vand.u32 %v257, 65535
        %v262 = vshrl.u32 %v257, 16
        %v263 = vmul.u32 %v259, %v261
        %v264 = vmul.u32 %v259, %v262
        %v265 = vmul.u32 %v260, %v261
        %v266 = vmul.u32 %v260, %v262
        %v267 = vshll.u32 %v264, 16
        %v268 = vshrl.u32 %v264, 16
        %v269 = vshll.u32 %v265, 16
        %v270 = vshrl.u32 %v265, 16
        %vm271 = vc.u32 %v263, %v267
        %v272 = vsel %vm271, 1, 0
        %v273 = vadd.s32 %v263, %v267
        %v274 = vadd.s32 %v266, %v272
        %vm275 = vc.u32 %v273, %v269
        %v276 = vsel %vm275, 1, 0
        %v277 = vadd.s32 %v273, %v269
        %v278 = vadd.s32 %v274, %v276
        %v279 = vadd.s32 %v278, %v268
        %v280 = vadd.s32 %v279, %v270
        %v281 = vand.u32 %v258, 65535
        %v282 = vshrl.u32 %v258, 16
        %v283 = vand.u32 %v253, 65535
        %v284 = vshrl.u32 %v253, 16
        %v285 = vmul.u32 %v281, %v283
        %v286 = vmul.u32 %v281, %v284
        %v287 = vmul.u32 %v282, %v283
        %v288 = vmul.u32 %v282, %v284
        %v289 = vshll.u32 %v286, 16
        %v290 = vshrl.u32 %v286, 16
        %v291 = vshll.u32 %v287, 16
        %v292 = vshrl.u32 %v287, 16
        %vm293 = vc.u32 %v285, %v289
        %v294 = vsel %vm293, 1, 0
        %v295 = vadd.s32 %v285, %v289
        %v296 = vadd.s32 %v288, %v294
        %vm297 = vc.u32 %v295, %v291
        %v298 = vsel %vm297, 1, 0
        %v299 = vadd.s32 %v295, %v291
        %v300 = vadd.s32 %v296, %v298
        %v301 = vadd.s32 %v300, %v290
        %v302 = vadd.s32 %v301, %v292
        %v303 = vmul.u32 %v258, %v249
        %v304 = vadd.s32 %v280, %v299
        %vm305 = vc.u32 %v280, %v299
        %v306 = vadd.s32 %v302, 1
        %v307 = vsel %vm305, %v306, %v302
        %v308 = vadd.s32 %v303, %v307
        %v309 = vadd.s32 %v308, 536870912
        %v310 = vshrl.u32 %v309, 30
        %v311 = vshll.u32 %v310, 30
        %v312 = vsub.s32 %v308, %v311
        %vm313 = vcmp.lt.s32.totalorder %v312, 0
        %v314 = vsub.s32 0, %v312
        %v315 = vsel %vm313, %v314, %v312
        %v316 = vclz %v315
        %v317 = vsub.s32 %v316, 2
        %vm318 = vcmp.gt.s32.totalorder 0, %v317
        %v319 = vsel %vm318, 0, %v317
        %v320 = vsub.s32 32, %v319
        %v321 = vshll.u32 %v312, %v319
        %v322 = vshrl.u32 %v304, %v320
        %v323 = vor.u32 %v321, %v322
        %v324 = vsub.s32 4294967266, %v319
        %v325 = vadd.s32 %v324, 127
        %v326 = vshll.u32 %v325, 23
        %v327 = vor.u32 4788187, %v326
        %v328 = vand.u32 2147483647, %v327
        %v330 = vcvt.s32.f32 %v323
        %v331 = vmul.f32 %v330, %v328
        %v332 = vxor.u32 %v331, 2147483648
        %v333 = vsel %vm212, %v332, %v331
        %v334 = vsub.s32 4, %v310
        %v335 = vsel %vm212, %v334, %v310
        %v336 = vsel %vm211, %v208, %v333
        %v337 = vsel %vm211, 0, %v335
        %v338 = vmul.f32 %v336, %v336
        %v339 = vmul.f32 %v338, -0.001358992
        %v340 = vadd.f32 %v339, 0.041655596
        %v341 = vmul.f32 %v338, %v340
        %v342 = vadd.f32 %v341, -0.4999988
        %v343 = vmul.f32 %v338, %v342
        %v344 = vadd.f32 1.0, %v343
        %v345 = vmul.f32 %v336, %v336
        %v346 = vmul.f32 %v345, -0.00019511016
        %v347 = vadd.f32 %v346, 0.008332121
        %v348 = vmul.f32 %v345, %v347
        %v349 = vadd.f32 %v348, -0.16666654
        %v350 = vmul.f32 %v345, %v349
        %v351 = vadd.f32 %v350, 1.0
        %v352 = vmul.f32 %v351, %v336
        %vm353 = vweird.f32 %v208
        %v354 = vadd.s32 %v337, 3
        %v355 = vand.u32 %v354, 3
        %vm356 = vcmp.lt.s32.totalorder %v355, 2
        %vm357 = vcmp.eq.s32.totalorder %v355, 0
        %v358 = vxor.u32 %v352, 2147483648
        %v359 = vsel %vm357, %v344, %v358
        %vm360 = vcmp.eq.s32.totalorder %v355, 2
        %v361 = vxor.u32 %v344, 2147483648
        %v362 = vsel %vm360, %v361, %v352
        %v363 = vsel %vm356, %v359, %v362
        %v364 = vsel %vm353, nan, %v363
        %v365 = vand.u32 2147483647, %v209
        %vm366 = vcmp.le.f32.partialorder %v365, 0.7853982
        %vm367 = vcmp.lt.s32.totalorder %v209, 0
        %v368 = vand.u32 %v209, 2139095040
        %v369 = vshrl.u32 %v368, 23
        %v370 = vsub.s32 %v369, 127
        %v371 = vand.u32 2147483647, %v209
        %v372 = vand.u32 %v371, 8388607
        %v373 = vor.u32 %v372, 8388608
        %v374 = vsub.s32 0, %v373
        %v375 = vadd.s32 %v370, 1
        %vm376 = vcmp.gt.s32.totalorder %v375, 0
        %v377 = vsel %vm376, %v375, 0
        %v378 = vshrl.u32 %v377, 5
        %v379 = vand.u32 %v377, 31
        %v380 = vsub.s32 32, %v379
        %v381 = vshrl.u32 683565275, %v380
        %v382 = vshll.u32 683565275, %v379
        %v383 = vshrl.u32 2475754826, %v380
        %v384 = vor.u32 %v382, %v383
        %v385 = vshll.u32 2475754826, %v379
        %v386 = vshrl.u32 2131351028, %v380
        %v387 = vor.u32 %v385, %v386
        %v388 = vshll.u32 2131351028, %v379
        %v389 = vshrl.u32 2102212464, %v380
        %v390 = vor.u32 %v388, %v389
        %v391 = vshll.u32 2102212464, %v379
        %v392 = vshrl.u32 920167782, %v380
        %v393 = vor.u32 %v391, %v392
        %v394 = vshll.u32 920167782, %v379
        %v395 = vshrl.u32 1326507024, %v380
        %v396 = vor.u32 %v394, %v395
        %vm397 = vcmp.lt.s32.totalorder %v378, 1
        %vm398 = vcmp.lt.s32.totalorder %v378, 2
        %vm399 = vcmp.lt.s32.totalorder %v378, 3
        %vm400 = vcmp.lt.s32.totalorder %v378, 4
        %v401 = vsel %vm397, %v381, %v384
        %v402 = vsel %vm400, %v390, 2102212464
        %v403 = vsel %vm399, %v387, %v402
        %v404 = vsel %vm398, %v401, %v403
        %v405 = vsel %vm397, %v384, %v387
        %v406 = vsel %vm400, %v393, 920167782
        %v407 = vsel %vm399, %v390, %v406
        %v408 = vsel %vm398, %v405, %v407
        %v409 = vsel %vm397, %v387, %v390
        %v410 = vsel %vm400, %v396, 1326507024
        %v411 = vsel %vm399, %v393, %v410
        %v412 = vsel %vm398, %v409, %v411
        %v413 = vshll.u32 %v373, 8
        %v414 = vand.u32 %v413, 65535
        %v415 = vshrl.u32 %v413, 16
        %v416 = vand.u32 %v412, 65535
        %v417 = vshrl.u32 %v412, 16
        %v418 = vmul.u32 %v414, %v416
        %v419 = vmul.u32 %v414, %v417
        %v420 = vmul.u32 %v415, %v416
        %v421 = vmul.u32 %v415, %v417
        %v422 = vshll.u32 %v419, 16
        %v423 = vshrl.u32 %v419, 16
        %v424 = vshll.u32 %v420, 16
        %v425 = vshrl.u32 %v420, 16
        %vm426 = vc.u32 %v418, %v422
        %v427 = vsel %vm426, 1, 0
        %v428 = vadd.s32 %v418, %v422
        %v429 = vadd.s32 %v421, %v427
        %vm430 = vc.u32 %v428, %v424
        %v431 = vsel %vm430, 1, 0
        %v432 = vadd.s32 %v428, %v424
        %v433 = vadd.s32 %v429, %v431
        %v434 = vadd.s32 %v433, %v423
        %v435 = vadd.s32 %v434, %v425
        %v436 = vand.u32 %v413, 65535
        %v437 = vshrl.u32 %v413, 16
        %v438 = vand.u32 %v408, 65535
        %v439 = vshrl.u32 %v408, 16
        %v440 = vmul.u32 %v436, %v438
        %v441 = vmul.u32 %v436, %v439
        %v442 = vmul.u32 %v437, %v438
        %v443 = vmul.u32 %v437, %v439
        %v444 = vshll.u32 %v441, 16
        %v445 = vshrl.u32 %v441, 16
        %v446 = vshll.u32 %v442, 16
        %v447 = vshrl.u32 %v442, 16
        %vm448 = vc.u32 %v440, %v444
        %v449 = vsel %vm448, 1, 0
        %v450 = vadd.s32 %v440, %v444
        %v451 = vadd.s32 %v443, %v449
        %vm452 = vc.u32 %v450, %v446
        %v453 = vsel %vm452, 1, 0
        %v454 = vadd.s32 %v450, %v446
        %v455 = vadd.s32 %v451, %v453
        %v456 = vadd.s32 %v455, %v445
        %v457 = vadd.s32 %v456, %v447
        %v458 = vmul.u32 %v413, %v404
        %v459 = vadd.s32 %v435, %v454
        %vm460 = vc.u32 %v435, %v454
        %v461 = vadd.s32 %v457, 1
        %v462 = vsel %vm460, %v461, %v457
        %v463 = vadd.s32 %v458, %v462
        %v464 = vadd.s32 %v463, 536870912
        %v465 = vshrl.u32 %v464, 30
        %v466 = vshll.u32 %v465, 30
        %v467 = vsub.s32 %v463, %v466
        %vm468 = vcmp.lt.s32.totalorder %v467, 0
        %v469 = vsub.s32 0, %v467
        %v470 = vsel %vm468, %v469, %v467
        %v471 = vclz %v470
        %v472 = vsub.s32 %v471, 2
        %vm473 = vcmp.gt.s32.totalorder 0, %v472
        %v474 = vsel %vm473, 0, %v472
        %v475 = vsub.s32 32, %v474
        %v476 = vshll.u32 %v467, %v474
        %v477 = vshrl.u32 %v459, %v475
        %v478 = vor.u32 %v476, %v477
        %v479 = vsub.s32 4294967266, %v474
        %v480 = vadd.s32 %v479, 127
        %v481 = vshll.u32 %v480, 23
        %v482 = vor.u32 4788187, %v481
        %v483 = vand.u32 2147483647, %v482
        %v485 = vcvt.s32.f32 %v478
        %v486 = vmul.f32 %v485, %v483
        %v487 = vxor.u32 %v486, 2147483648
        %v488 = vsel %vm367, %v487, %v486
        %v489 = vsub.s32 4, %v465
        %v490 = vsel %vm367, %v489, %v465
        %v491 = vsel %vm366, %v209, %v488
        %v492 = vsel %vm366, 0, %v490
        %v493 = vmul.f32 %v491, %v491
        %v494 = vmul.f32 %v493, -0.001358992
        %v495 = vadd.f32 %v494, 0.041655596
        %v496 = vmul.f32 %v493, %v495
        %v497 = vadd.f32 %v496, -0.4999988
        %v498 = vmul.f32 %v493, %v497
        %v499 = vadd.f32 1.0, %v498
        %v500 = vmul.f32 %v491, %v491
        %v501 = vmul.f32 %v500, -0.00019511016
        %v502 = vadd.f32 %v501, 0.008332121
        %v503 = vmul.f32 %v500, %v502
        %v504 = vadd.f32 %v503, -0.16666654
        %v505 = vmul.f32 %v500, %v504
        %v506 = vadd.f32 %v505, 1.0
        %v507 = vmul.f32 %v506, %v491
        %vm508 = vweird.f32 %v209
        %v509 = vadd.s32 %v492, 3
        %v510 = vand.u32 %v509, 3
        %vm511 = vcmp.lt.s32.totalorder %v510, 2
        %vm512 = vcmp.eq.s32.totalorder %v510, 0
        %v513 = vxor.u32 %v507, 2147483648
        %v514 = vsel %vm512, %v499, %v513
        %vm515 = vcmp.eq.s32.totalorder %v510, 2
        %v516 = vxor.u32 %v499, 2147483648
        %v517 = vsel %vm515, %v516, %v507
        %v518 = vsel %vm511, %v514, %v517
        %v519 = vsel %vm508, nan, %v518
        %520 = vst [vmem:[%s178] sm:$0xff] %v364
        %521 = vst [vmem:[%s178 + $0x8] sm:$0xff] %v519
        %s522 = sadd.s32 %s200, 2
        %s523 = scvt.s32.f32 %s522
        %v524 = vstv %s523
        %v525 = vmul.f32 %v524, %v199
        %v527 = vperm.slane %v525, 0
        %v529 = vadd.f32 %v527, %v197
        %v530 = vadd.f32 %v527, %v198
        %v531 = vand.u32 2147483647, %v529
        %vm532 = vcmp.le.f32.partialorder %v531, 0.7853982
        %vm533 = vcmp.lt.s32.totalorder %v529, 0
        %v534 = vand.u32 %v529, 2139095040
        %v535 = vshrl.u32 %v534, 23
        %v536 = vsub.s32 %v535, 127
        %v537 = vand.u32 2147483647, %v529
        %v538 = vand.u32 %v537, 8388607
        %v539 = vor.u32 %v538, 8388608
        %v540 = vsub.s32 0, %v539
        %v541 = vadd.s32 %v536, 1
        %vm542 = vcmp.gt.s32.totalorder %v541, 0
        %v543 = vsel %vm542, %v541, 0
        %v544 = vshrl.u32 %v543, 5
        %v545 = vand.u32 %v543, 31
        %v546 = vsub.s32 32, %v545
        %v547 = vshrl.u32 683565275, %v546
        %v548 = vshll.u32 683565275, %v545
        %v549 = vshrl.u32 2475754826, %v546
        %v550 = vor.u32 %v548, %v549
        %v551 = vshll.u32 2475754826, %v545
        %v552 = vshrl.u32 2131351028, %v546
        %v553 = vor.u32 %v551, %v552
        %v554 = vshll.u32 2131351028, %v545
        %v555 = vshrl.u32 2102212464, %v546
        %v556 = vor.u32 %v554, %v555
        %v557 = vshll.u32 2102212464, %v545
        %v558 = vshrl.u32 920167782, %v546
        %v559 = vor.u32 %v557, %v558
        %v560 = vshll.u32 920167782, %v545
        %v561 = vshrl.u32 1326507024, %v546
        %v562 = vor.u32 %v560, %v561
        %vm563 = vcmp.lt.s32.totalorder %v544, 1
        %vm564 = vcmp.lt.s32.totalorder %v544, 2
        %vm565 = vcmp.lt.s32.totalorder %v544, 3
        %vm566 = vcmp.lt.s32.totalorder %v544, 4
        %v567 = vsel %vm563, %v547, %v550
        %v568 = vsel %vm566, %v556, 2102212464
        %v569 = vsel %vm565, %v553, %v568
        %v570 = vsel %vm564, %v567, %v569
        %v571 = vsel %vm563, %v550, %v553
        %v572 = vsel %vm566, %v559, 920167782
        %v573 = vsel %vm565, %v556, %v572
        %v574 = vsel %vm564, %v571, %v573
        %v575 = vsel %vm563, %v553, %v556
        %v576 = vsel %vm566, %v562, 1326507024
        %v577 = vsel %vm565, %v559, %v576
        %v578 = vsel %vm564, %v575, %v577
        %v579 = vshll.u32 %v539, 8
        %v580 = vand.u32 %v579, 65535
        %v581 = vshrl.u32 %v579, 16
        %v582 = vand.u32 %v578, 65535
        %v583 = vshrl.u32 %v578, 16
        %v584 = vmul.u32 %v580, %v582
        %v585 = vmul.u32 %v580, %v583
        %v586 = vmul.u32 %v581, %v582
        %v587 = vmul.u32 %v581, %v583
        %v588 = vshll.u32 %v585, 16
        %v589 = vshrl.u32 %v585, 16
        %v590 = vshll.u32 %v586, 16
        %v591 = vshrl.u32 %v586, 16
        %vm592 = vc.u32 %v584, %v588
        %v593 = vsel %vm592, 1, 0
        %v594 = vadd.s32 %v584, %v588
        %v595 = vadd.s32 %v587, %v593
        %vm596 = vc.u32 %v594, %v590
        %v597 = vsel %vm596, 1, 0
        %v598 = vadd.s32 %v594, %v590
        %v599 = vadd.s32 %v595, %v597
        %v600 = vadd.s32 %v599, %v589
        %v601 = vadd.s32 %v600, %v591
        %v602 = vand.u32 %v579, 65535
        %v603 = vshrl.u32 %v579, 16
        %v604 = vand.u32 %v574, 65535
        %v605 = vshrl.u32 %v574, 16
        %v606 = vmul.u32 %v602, %v604
        %v607 = vmul.u32 %v602, %v605
        %v608 = vmul.u32 %v603, %v604
        %v609 = vmul.u32 %v603, %v605
        %v610 = vshll.u32 %v607, 16
        %v611 = vshrl.u32 %v607, 16
        %v612 = vshll.u32 %v608, 16
        %v613 = vshrl.u32 %v608, 16
        %vm614 = vc.u32 %v606, %v610
        %v615 = vsel %vm614, 1, 0
        %v616 = vadd.s32 %v606, %v610
        %v617 = vadd.s32 %v609, %v615
        %vm618 = vc.u32 %v616, %v612
        %v619 = vsel %vm618, 1, 0
        %v620 = vadd.s32 %v616, %v612
        %v621 = vadd.s32 %v617, %v619
        %v622 = vadd.s32 %v621, %v611
        %v623 = vadd.s32 %v622, %v613
        %v624 = vmul.u32 %v579, %v570
        %v625 = vadd.s32 %v601, %v620
        %vm626 = vc.u32 %v601, %v620
        %v627 = vadd.s32 %v623, 1
        %v628 = vsel %vm626, %v627, %v623
        %v629 = vadd.s32 %v624, %v628
        %v630 = vadd.s32 %v629, 536870912
        %v631 = vshrl.u32 %v630, 30
        %v632 = vshll.u32 %v631, 30
        %v633 = vsub.s32 %v629, %v632
        %vm634 = vcmp.lt.s32.totalorder %v633, 0
        %v635 = vsub.s32 0, %v633
        %v636 = vsel %vm634, %v635, %v633
        %v637 = vclz %v636
        %v638 = vsub.s32 %v637, 2
        %vm639 = vcmp.gt.s32.totalorder 0, %v638
        %v640 = vsel %vm639, 0, %v638
        %v641 = vsub.s32 32, %v640
        %v642 = vshll.u32 %v633, %v640
        %v643 = vshrl.u32 %v625, %v641
        %v644 = vor.u32 %v642, %v643
        %v645 = vsub.s32 4294967266, %v640
        %v646 = vadd.s32 %v645, 127
        %v647 = vshll.u32 %v646, 23
        %v648 = vor.u32 4788187, %v647
        %v649 = vand.u32 2147483647, %v648
        %v651 = vcvt.s32.f32 %v644
        %v652 = vmul.f32 %v651, %v649
        %v653 = vxor.u32 %v652, 2147483648
        %v654 = vsel %vm533, %v653, %v652
        %v655 = vsub.s32 4, %v631
        %v656 = vsel %vm533, %v655, %v631
        %v657 = vsel %vm532, %v529, %v654
        %v658 = vsel %vm532, 0, %v656
        %v659 = vmul.f32 %v657, %v657
        %v660 = vmul.f32 %v659, -0.001358992
        %v661 = vadd.f32 %v660, 0.041655596
        %v662 = vmul.f32 %v659, %v661
        %v663 = vadd.f32 %v662, -0.4999988
        %v664 = vmul.f32 %v659, %v663
        %v665 = vadd.f32 1.0, %v664
        %v666 = vmul.f32 %v657, %v657
        %v667 = vmul.f32 %v666, -0.00019511016
        %v668 = vadd.f32 %v667, 0.008332121
        %v669 = vmul.f32 %v666, %v668
        %v670 = vadd.f32 %v669, -0.16666654
        %v671 = vmul.f32 %v666, %v670
        %v672 = vadd.f32 %v671, 1.0
        %v673 = vmul.f32 %v672, %v657
        %vm674 = vweird.f32 %v529
        %v675 = vadd.s32 %v658, 3
        %v676 = vand.u32 %v675, 3
        %vm677 = vcmp.lt.s32.totalorder %v676, 2
        %vm678 = vcmp.eq.s32.totalorder %v676, 0
        %v679 = vxor.u32 %v673, 2147483648
        %v680 = vsel %vm678, %v665, %v679
        %vm681 = vcmp.eq.s32.totalorder %v676, 2
        %v682 = vxor.u32 %v665, 2147483648
        %v683 = vsel %vm681, %v682, %v673
        %v684 = vsel %vm677, %v680, %v683
        %v685 = vsel %vm674, nan, %v684
        %v686 = vand.u32 2147483647, %v530
        %vm687 = vcmp.le.f32.partialorder %v686, 0.7853982
        %vm688 = vcmp.lt.s32.totalorder %v530, 0
        %v689 = vand.u32 %v530, 2139095040
        %v690 = vshrl.u32 %v689, 23
        %v691 = vsub.s32 %v690, 127
        %v692 = vand.u32 2147483647, %v530
        %v693 = vand.u32 %v692, 8388607
        %v694 = vor.u32 %v693, 8388608
        %v695 = vsub.s32 0, %v694
        %v696 = vadd.s32 %v691, 1
        %vm697 = vcmp.gt.s32.totalorder %v696, 0
        %v698 = vsel %vm697, %v696, 0
        %v699 = vshrl.u32 %v698, 5
        %v700 = vand.u32 %v698, 31
        %v701 = vsub.s32 32, %v700
        %v702 = vshrl.u32 683565275, %v701
        %v703 = vshll.u32 683565275, %v700
        %v704 = vshrl.u32 2475754826, %v701
        %v705 = vor.u32 %v703, %v704
        %v706 = vshll.u32 2475754826, %v700
        %v707 = vshrl.u32 2131351028, %v701
        %v708 = vor.u32 %v706, %v707
        %v709 = vshll.u32 2131351028, %v700
        %v710 = vshrl.u32 2102212464, %v701
        %v711 = vor.u32 %v709, %v710
        %v712 = vshll.u32 2102212464, %v700
        %v713 = vshrl.u32 920167782, %v701
        %v714 = vor.u32 %v712, %v713
        %v715 = vshll.u32 920167782, %v700
        %v716 = vshrl.u32 1326507024, %v701
        %v717 = vor.u32 %v715, %v716
        %vm718 = vcmp.lt.s32.totalorder %v699, 1
        %vm719 = vcmp.lt.s32.totalorder %v699, 2
        %vm720 = vcmp.lt.s32.totalorder %v699, 3
        %vm721 = vcmp.lt.s32.totalorder %v699, 4
        %v722 = vsel %vm718, %v702, %v705
        %v723 = vsel %vm721, %v711, 2102212464
        %v724 = vsel %vm720, %v708, %v723
        %v725 = vsel %vm719, %v722, %v724
        %v726 = vsel %vm718, %v705, %v708
        %v727 = vsel %vm721, %v714, 920167782
        %v728 = vsel %vm720, %v711, %v727
        %v729 = vsel %vm719, %v726, %v728
        %v730 = vsel %vm718, %v708, %v711
        %v731 = vsel %vm721, %v717, 1326507024
        %v732 = vsel %vm720, %v714, %v731
        %v733 = vsel %vm719, %v730, %v732
        %v734 = vshll.u32 %v694, 8
        %v735 = vand.u32 %v734, 65535
        %v736 = vshrl.u32 %v734, 16
        %v737 = vand.u32 %v733, 65535
        %v738 = vshrl.u32 %v733, 16
        %v739 = vmul.u32 %v735, %v737
        %v740 = vmul.u32 %v735, %v738
        %v741 = vmul.u32 %v736, %v737
        %v742 = vmul.u32 %v736, %v738
        %v743 = vshll.u32 %v740, 16
        %v744 = vshrl.u32 %v740, 16
        %v745 = vshll.u32 %v741, 16
        %v746 = vshrl.u32 %v741, 16
        %vm747 = vc.u32 %v739, %v743
        %v748 = vsel %vm747, 1, 0
        %v749 = vadd.s32 %v739, %v743
        %v750 = vadd.s32 %v742, %v748
        %vm751 = vc.u32 %v749, %v745
        %v752 = vsel %vm751, 1, 0
        %v753 = vadd.s32 %v749, %v745
        %v754 = vadd.s32 %v750, %v752
        %v755 = vadd.s32 %v754, %v744
        %v756 = vadd.s32 %v755, %v746
        %v757 = vand.u32 %v734, 65535
        %v758 = vshrl.u32 %v734, 16
        %v759 = vand.u32 %v729, 65535
        %v760 = vshrl.u32 %v729, 16
        %v761 = vmul.u32 %v757, %v759
        %v762 = vmul.u32 %v757, %v760
        %v763 = vmul.u32 %v758, %v759
        %v764 = vmul.u32 %v758, %v760
        %v765 = vshll.u32 %v762, 16
        %v766 = vshrl.u32 %v762, 16
        %v767 = vshll.u32 %v763, 16
        %v768 = vshrl.u32 %v763, 16
        %vm769 = vc.u32 %v761, %v765
        %v770 = vsel %vm769, 1, 0
        %v771 = vadd.s32 %v761, %v765
        %v772 = vadd.s32 %v764, %v770
        %vm773 = vc.u32 %v771, %v767
        %v774 = vsel %vm773, 1, 0
        %v775 = vadd.s32 %v771, %v767
        %v776 = vadd.s32 %v772, %v774
        %v777 = vadd.s32 %v776, %v766
        %v778 = vadd.s32 %v777, %v768
        %v779 = vmul.u32 %v734, %v725
        %v780 = vadd.s32 %v756, %v775
        %vm781 = vc.u32 %v756, %v775
        %v782 = vadd.s32 %v778, 1
        %v783 = vsel %vm781, %v782, %v778
        %v784 = vadd.s32 %v779, %v783
        %v785 = vadd.s32 %v784, 536870912
        %v786 = vshrl.u32 %v785, 30
        %v787 = vshll.u32 %v786, 30
        %v788 = vsub.s32 %v784, %v787
        %vm789 = vcmp.lt.s32.totalorder %v788, 0
        %v790 = vsub.s32 0, %v788
        %v791 = vsel %vm789, %v790, %v788
        %v792 = vclz %v791
        %v793 = vsub.s32 %v792, 2
        %vm794 = vcmp.gt.s32.totalorder 0, %v793
        %v795 = vsel %vm794, 0, %v793
        %v796 = vsub.s32 32, %v795
        %v797 = vshll.u32 %v788, %v795
        %v798 = vshrl.u32 %v780, %v796
        %v799 = vor.u32 %v797, %v798
        %v800 = vsub.s32 4294967266, %v795
        %v801 = vadd.s32 %v800, 127
        %v802 = vshll.u32 %v801, 23
        %v803 = vor.u32 4788187, %v802
        %v804 = vand.u32 2147483647, %v803
        %v806 = vcvt.s32.f32 %v799
        %v807 = vmul.f32 %v806, %v804
        %v808 = vxor.u32 %v807, 2147483648
        %v809 = vsel %vm688, %v808, %v807
        %v810 = vsub.s32 4, %v786
        %v811 = vsel %vm688, %v810, %v786
        %v812 = vsel %vm687, %v530, %v809
        %v813 = vsel %vm687, 0, %v811
        %v814 = vmul.f32 %v812, %v812
        %v815 = vmul.f32 %v814, -0.001358992
        %v816 = vadd.f32 %v815, 0.041655596
        %v817 = vmul.f32 %v814, %v816
        %v818 = vadd.f32 %v817, -0.4999988
        %v819 = vmul.f32 %v814, %v818
        %v820 = vadd.f32 1.0, %v819
        %v821 = vmul.f32 %v812, %v812
        %v822 = vmul.f32 %v821, -0.00019511016
        %v823 = vadd.f32 %v822, 0.008332121
        %v824 = vmul.f32 %v821, %v823
        %v825 = vadd.f32 %v824, -0.16666654
        %v826 = vmul.f32 %v821, %v825
        %v827 = vadd.f32 %v826, 1.0
        %v828 = vmul.f32 %v827, %v812
        %vm829 = vweird.f32 %v530
        %v830 = vadd.s32 %v813, 3
        %v831 = vand.u32 %v830, 3
        %vm832 = vcmp.lt.s32.totalorder %v831, 2
        %vm833 = vcmp.eq.s32.totalorder %v831, 0
        %v834 = vxor.u32 %v828, 2147483648
        %v835 = vsel %vm833, %v820, %v834
        %vm836 = vcmp.eq.s32.totalorder %v831, 2
        %v837 = vxor.u32 %v820, 2147483648
        %v838 = vsel %vm836, %v837, %v828
        %v839 = vsel %vm832, %v835, %v838
        %v840 = vsel %vm829, nan, %v839
        %s841 = scalar_lea.vmem %s178, 16 [#allocation7]
        %842 = vst [vmem:[%s841] sm:$0xff] %v685
        %843 = vst [vmem:[%s841 + $0x8] sm:$0xff] %v840
        %s844 = sadd.s32 %s200, 3
        %s845 = scvt.s32.f32 %s844
        %v846 = vstv %s845
        %v847 = vmul.f32 %v846, %v199
        %v849 = vperm.slane %v847, 0
        %v851 = vadd.f32 %v849, %v197
        %v852 = vadd.f32 %v849, %v198
        %v853 = vand.u32 2147483647, %v851
        %vm854 = vcmp.le.f32.partialorder %v853, 0.7853982
        %vm855 = vcmp.lt.s32.totalorder %v851, 0
        %v856 = vand.u32 %v851, 2139095040
        %v857 = vshrl.u32 %v856, 23
        %v858 = vsub.s32 %v857, 127
        %v859 = vand.u32 2147483647, %v851
        %v860 = vand.u32 %v859, 8388607
        %v861 = vor.u32 %v860, 8388608
        %v862 = vsub.s32 0, %v861
        %v863 = vadd.s32 %v858, 1
        %vm864 = vcmp.gt.s32.totalorder %v863, 0
        %v865 = vsel %vm864, %v863, 0
        %v866 = vshrl.u32 %v865, 5
        %v867 = vand.u32 %v865, 31
        %v868 = vsub.s32 32, %v867
        %v869 = vshrl.u32 683565275, %v868
        %v870 = vshll.u32 683565275, %v867
        %v871 = vshrl.u32 2475754826, %v868
        %v872 = vor.u32 %v870, %v871
        %v873 = vshll.u32 2475754826, %v867
        %v874 = vshrl.u32 2131351028, %v868
        %v875 = vor.u32 %v873, %v874
        %v876 = vshll.u32 2131351028, %v867
        %v877 = vshrl.u32 2102212464, %v868
        %v878 = vor.u32 %v876, %v877
        %v879 = vshll.u32 2102212464, %v867
        %v880 = vshrl.u32 920167782, %v868
        %v881 = vor.u32 %v879, %v880
        %v882 = vshll.u32 920167782, %v867
        %v883 = vshrl.u32 1326507024, %v868
        %v884 = vor.u32 %v882, %v883
        %vm885 = vcmp.lt.s32.totalorder %v866, 1
        %vm886 = vcmp.lt.s32.totalorder %v866, 2
        %vm887 = vcmp.lt.s32.totalorder %v866, 3
        %vm888 = vcmp.lt.s32.totalorder %v866, 4
        %v889 = vsel %vm885, %v869, %v872
        %v890 = vsel %vm888, %v878, 2102212464
        %v891 = vsel %vm887, %v875, %v890
        %v892 = vsel %vm886, %v889, %v891
        %v893 = vsel %vm885, %v872, %v875
        %v894 = vsel %vm888, %v881, 920167782
        %v895 = vsel %vm887, %v878, %v894
        %v896 = vsel %vm886, %v893, %v895
        %v897 = vsel %vm885, %v875, %v878
        %v898 = vsel %vm888, %v884, 1326507024
        %v899 = vsel %vm887, %v881, %v898
        %v900 = vsel %vm886, %v897, %v899
        %v901 = vshll.u32 %v861, 8
        %v902 = vand.u32 %v901, 65535
        %v903 = vshrl.u32 %v901, 16
        %v904 = vand.u32 %v900, 65535
        %v905 = vshrl.u32 %v900, 16
        %v906 = vmul.u32 %v902, %v904
        %v907 = vmul.u32 %v902, %v905
        %v908 = vmul.u32 %v903, %v904
        %v909 = vmul.u32 %v903, %v905
        %v910 = vshll.u32 %v907, 16
        %v911 = vshrl.u32 %v907, 16
        %v912 = vshll.u32 %v908, 16
        %v913 = vshrl.u32 %v908, 16
        %vm914 = vc.u32 %v906, %v910
        %v915 = vsel %vm914, 1, 0
        %v916 = vadd.s32 %v906, %v910
        %v917 = vadd.s32 %v909, %v915
        %vm918 = vc.u32 %v916, %v912
        %v919 = vsel %vm918, 1, 0
        %v920 = vadd.s32 %v916, %v912
        %v921 = vadd.s32 %v917, %v919
        %v922 = vadd.s32 %v921, %v911
        %v923 = vadd.s32 %v922, %v913
        %v924 = vand.u32 %v901, 65535
        %v925 = vshrl.u32 %v901, 16
        %v926 = vand.u32 %v896, 65535
        %v927 = vshrl.u32 %v896, 16
        %v928 = vmul.u32 %v924, %v926
        %v929 = vmul.u32 %v924, %v927
        %v930 = vmul.u32 %v925, %v926
        %v931 = vmul.u32 %v925, %v927
        %v932 = vshll.u32 %v929, 16
        %v933 = vshrl.u32 %v929, 16
        %v934 = vshll.u32 %v930, 16
        %v935 = vshrl.u32 %v930, 16
        %vm936 = vc.u32 %v928, %v932
        %v937 = vsel %vm936, 1, 0
        %v938 = vadd.s32 %v928, %v932
        %v939 = vadd.s32 %v931, %v937
        %vm940 = vc.u32 %v938, %v934
        %v941 = vsel %vm940, 1, 0
        %v942 = vadd.s32 %v938, %v934
        %v943 = vadd.s32 %v939, %v941
        %v944 = vadd.s32 %v943, %v933
        %v945 = vadd.s32 %v944, %v935
        %v946 = vmul.u32 %v901, %v892
        %v947 = vadd.s32 %v923, %v942
        %vm948 = vc.u32 %v923, %v942
        %v949 = vadd.s32 %v945, 1
        %v950 = vsel %vm948, %v949, %v945
        %v951 = vadd.s32 %v946, %v950
        %v952 = vadd.s32 %v951, 536870912
        %v953 = vshrl.u32 %v952, 30
        %v954 = vshll.u32 %v953, 30
        %v955 = vsub.s32 %v951, %v954
        %vm956 = vcmp.lt.s32.totalorder %v955, 0
        %v957 = vsub.s32 0, %v955
        %v958 = vsel %vm956, %v957, %v955
        %v959 = vclz %v958
        %v960 = vsub.s32 %v959, 2
        %vm961 = vcmp.gt.s32.totalorder 0, %v960
        %v962 = vsel %vm961, 0, %v960
        %v963 = vsub.s32 32, %v962
        %v964 = vshll.u32 %v955, %v962
        %v965 = vshrl.u32 %v947, %v963
        %v966 = vor.u32 %v964, %v965
        %v967 = vsub.s32 4294967266, %v962
        %v968 = vadd.s32 %v967, 127
        %v969 = vshll.u32 %v968, 23
        %v970 = vor.u32 4788187, %v969
        %v971 = vand.u32 2147483647, %v970
        %v973 = vcvt.s32.f32 %v966
        %v974 = vmul.f32 %v973, %v971
        %v975 = vxor.u32 %v974, 2147483648
        %v976 = vsel %vm855, %v975, %v974
        %v977 = vsub.s32 4, %v953
        %v978 = vsel %vm855, %v977, %v953
        %v979 = vsel %vm854, %v851, %v976
        %v980 = vsel %vm854, 0, %v978
        %v981 = vmul.f32 %v979, %v979
        %v982 = vmul.f32 %v981, -0.001358992
        %v983 = vadd.f32 %v982, 0.041655596
        %v984 = vmul.f32 %v981, %v983
        %v985 = vadd.f32 %v984, -0.4999988
        %v986 = vmul.f32 %v981, %v985
        %v987 = vadd.f32 1.0, %v986
        %v988 = vmul.f32 %v979, %v979
        %v989 = vmul.f32 %v988, -0.00019511016
        %v990 = vadd.f32 %v989, 0.008332121
        %v991 = vmul.f32 %v988, %v990
        %v992 = vadd.f32 %v991, -0.16666654
        %v993 = vmul.f32 %v988, %v992
        %v994 = vadd.f32 %v993, 1.0
        %v995 = vmul.f32 %v994, %v979
        %vm996 = vweird.f32 %v851
        %v997 = vadd.s32 %v980, 3
        %v998 = vand.u32 %v997, 3
        %vm999 = vcmp.lt.s32.totalorder %v998, 2
        %vm1000 = vcmp.eq.s32.totalorder %v998, 0
        %v1001 = vxor.u32 %v995, 2147483648
        %v1002 = vsel %vm1000, %v987, %v1001
        %vm1003 = vcmp.eq.s32.totalorder %v998, 2
        %v1004 = vxor.u32 %v987, 2147483648
        %v1005 = vsel %vm1003, %v1004, %v995
        %v1006 = vsel %vm999, %v1002, %v1005
        %v1007 = vsel %vm996, nan, %v1006
        %v1008 = vand.u32 2147483647, %v852
        %vm1009 = vcmp.le.f32.partialorder %v1008, 0.7853982
        %vm1010 = vcmp.lt.s32.totalorder %v852, 0
        %v1011 = vand.u32 %v852, 2139095040
        %v1012 = vshrl.u32 %v1011, 23
        %v1013 = vsub.s32 %v1012, 127
        %v1014 = vand.u32 2147483647, %v852
        %v1015 = vand.u32 %v1014, 8388607
        %v1016 = vor.u32 %v1015, 8388608
        %v1017 = vsub.s32 0, %v1016
        %v1018 = vadd.s32 %v1013, 1
        %vm1019 = vcmp.gt.s32.totalorder %v1018, 0
        %v1020 = vsel %vm1019, %v1018, 0
        %v1021 = vshrl.u32 %v1020, 5
        %v1022 = vand.u32 %v1020, 31
        %v1023 = vsub.s32 32, %v1022
        %v1024 = vshrl.u32 683565275, %v1023
        %v1025 = vshll.u32 683565275, %v1022
        %v1026 = vshrl.u32 2475754826, %v1023
        %v1027 = vor.u32 %v1025, %v1026
        %v1028 = vshll.u32 2475754826, %v1022
        %v1029 = vshrl.u32 2131351028, %v1023
        %v1030 = vor.u32 %v1028, %v1029
        %v1031 = vshll.u32 2131351028, %v1022
        %v1032 = vshrl.u32 2102212464, %v1023
        %v1033 = vor.u32 %v1031, %v1032
        %v1034 = vshll.u32 2102212464, %v1022
        %v1035 = vshrl.u32 920167782, %v1023
        %v1036 = vor.u32 %v1034, %v1035
        %v1037 = vshll.u32 920167782, %v1022
        %v1038 = vshrl.u32 1326507024, %v1023
        %v1039 = vor.u32 %v1037, %v1038
        %vm1040 = vcmp.lt.s32.totalorder %v1021, 1
        %vm1041 = vcmp.lt.s32.totalorder %v1021, 2
        %vm1042 = vcmp.lt.s32.totalorder %v1021, 3
        %vm1043 = vcmp.lt.s32.totalorder %v1021, 4
        %v1044 = vsel %vm1040, %v1024, %v1027
        %v1045 = vsel %vm1043, %v1033, 2102212464
        %v1046 = vsel %vm1042, %v1030, %v1045
        %v1047 = vsel %vm1041, %v1044, %v1046
        %v1048 = vsel %vm1040, %v1027, %v1030
        %v1049 = vsel %vm1043, %v1036, 920167782
        %v1050 = vsel %vm1042, %v1033, %v1049
        %v1051 = vsel %vm1041, %v1048, %v1050
        %v1052 = vsel %vm1040, %v1030, %v1033
        %v1053 = vsel %vm1043, %v1039, 1326507024
        %v1054 = vsel %vm1042, %v1036, %v1053
        %v1055 = vsel %vm1041, %v1052, %v1054
        %v1056 = vshll.u32 %v1016, 8
        %v1057 = vand.u32 %v1056, 65535
        %v1058 = vshrl.u32 %v1056, 16
        %v1059 = vand.u32 %v1055, 65535
        %v1060 = vshrl.u32 %v1055, 16
        %v1061 = vmul.u32 %v1057, %v1059
        %v1062 = vmul.u32 %v1057, %v1060
        %v1063 = vmul.u32 %v1058, %v1059
        %v1064 = vmul.u32 %v1058, %v1060
        %v1065 = vshll.u32 %v1062, 16
        %v1066 = vshrl.u32 %v1062, 16
        %v1067 = vshll.u32 %v1063, 16
        %v1068 = vshrl.u32 %v1063, 16
        %vm1069 = vc.u32 %v1061, %v1065
        %v1070 = vsel %vm1069, 1, 0
        %v1071 = vadd.s32 %v1061, %v1065
        %v1072 = vadd.s32 %v1064, %v1070
        %vm1073 = vc.u32 %v1071, %v1067
        %v1074 = vsel %vm1073, 1, 0
        %v1075 = vadd.s32 %v1071, %v1067
        %v1076 = vadd.s32 %v1072, %v1074
        %v1077 = vadd.s32 %v1076, %v1066
        %v1078 = vadd.s32 %v1077, %v1068
        %v1079 = vand.u32 %v1056, 65535
        %v1080 = vshrl.u32 %v1056, 16
        %v1081 = vand.u32 %v1051, 65535
        %v1082 = vshrl.u32 %v1051, 16
        %v1083 = vmul.u32 %v1079, %v1081
        %v1084 = vmul.u32 %v1079, %v1082
        %v1085 = vmul.u32 %v1080, %v1081
        %v1086 = vmul.u32 %v1080, %v1082
        %v1087 = vshll.u32 %v1084, 16
        %v1088 = vshrl.u32 %v1084, 16
        %v1089 = vshll.u32 %v1085, 16
        %v1090 = vshrl.u32 %v1085, 16
        %vm1091 = vc.u32 %v1083, %v1087
        %v1092 = vsel %vm1091, 1, 0
        %v1093 = vadd.s32 %v1083, %v1087
        %v1094 = vadd.s32 %v1086, %v1092
        %vm1095 = vc.u32 %v1093, %v1089
        %v1096 = vsel %vm1095, 1, 0
        %v1097 = vadd.s32 %v1093, %v1089
        %v1098 = vadd.s32 %v1094, %v1096
        %v1099 = vadd.s32 %v1098, %v1088
        %v1100 = vadd.s32 %v1099, %v1090
        %v1101 = vmul.u32 %v1056, %v1047
        %v1102 = vadd.s32 %v1078, %v1097
        %vm1103 = vc.u32 %v1078, %v1097
        %v1104 = vadd.s32 %v1100, 1
        %v1105 = vsel %vm1103, %v1104, %v1100
        %v1106 = vadd.s32 %v1101, %v1105
        %v1107 = vadd.s32 %v1106, 536870912
        %v1108 = vshrl.u32 %v1107, 30
        %v1109 = vshll.u32 %v1108, 30
        %v1110 = vsub.s32 %v1106, %v1109
        %vm1111 = vcmp.lt.s32.totalorder %v1110, 0
        %v1112 = vsub.s32 0, %v1110
        %v1113 = vsel %vm1111, %v1112, %v1110
        %v1114 = vclz %v1113
        %v1115 = vsub.s32 %v1114, 2
        %vm1116 = vcmp.gt.s32.totalorder 0, %v1115
        %v1117 = vsel %vm1116, 0, %v1115
        %v1118 = vsub.s32 32, %v1117
        %v1119 = vshll.u32 %v1110, %v1117
        %v1120 = vshrl.u32 %v1102, %v1118
        %v1121 = vor.u32 %v1119, %v1120
        %v1122 = vsub.s32 4294967266, %v1117
        %v1123 = vadd.s32 %v1122, 127
        %v1124 = vshll.u32 %v1123, 23
        %v1125 = vor.u32 4788187, %v1124
        %v1126 = vand.u32 2147483647, %v1125
        %v1128 = vcvt.s32.f32 %v1121
        %v1129 = vmul.f32 %v1128, %v1126
        %v1130 = vxor.u32 %v1129, 2147483648
        %v1131 = vsel %vm1010, %v1130, %v1129
        %v1132 = vsub.s32 4, %v1108
        %v1133 = vsel %vm1010, %v1132, %v1108
        %v1134 = vsel %vm1009, %v852, %v1131
        %v1135 = vsel %vm1009, 0, %v1133
        %v1136 = vmul.f32 %v1134, %v1134
        %v1137 = vmul.f32 %v1136, -0.001358992
        %v1138 = vadd.f32 %v1137, 0.041655596
        %v1139 = vmul.f32 %v1136, %v1138
        %v1140 = vadd.f32 %v1139, -0.4999988
        %v1141 = vmul.f32 %v1136, %v1140
        %v1142 = vadd.f32 1.0, %v1141
        %v1143 = vmul.f32 %v1134, %v1134
        %v1144 = vmul.f32 %v1143, -0.00019511016
        %v1145 = vadd.f32 %v1144, 0.008332121
        %v1146 = vmul.f32 %v1143, %v1145
        %v1147 = vadd.f32 %v1146, -0.16666654
        %v1148 = vmul.f32 %v1143, %v1147
        %v1149 = vadd.f32 %v1148, 1.0
        %v1150 = vmul.f32 %v1149, %v1134
        %vm1151 = vweird.f32 %v852
        %v1152 = vadd.s32 %v1135, 3
        %v1153 = vand.u32 %v1152, 3
        %vm1154 = vcmp.lt.s32.totalorder %v1153, 2
        %vm1155 = vcmp.eq.s32.totalorder %v1153, 0
        %v1156 = vxor.u32 %v1150, 2147483648
        %v1157 = vsel %vm1155, %v1142, %v1156
        %vm1158 = vcmp.eq.s32.totalorder %v1153, 2
        %v1159 = vxor.u32 %v1142, 2147483648
        %v1160 = vsel %vm1158, %v1159, %v1150
        %v1161 = vsel %vm1154, %v1157, %v1160
        %v1162 = vsel %vm1151, nan, %v1161
        %s1163 = scalar_lea.vmem %s178, 32 [#allocation7]
        %1164 = vst [vmem:[%s1163] sm:$0xff] %v1007
        %1165 = vst [vmem:[%s1163 + $0x8] sm:$0xff] %v1162
        %s1166 = sadd.s32 %s200, 4
        %s1167 = scvt.s32.f32 %s1166
        %v1168 = vstv %s1167
        %v1169 = vmul.f32 %v1168, %v199
        %v1171 = vperm.slane %v1169, 0
        %v1173 = vadd.f32 %v1171, %v197
        %v1174 = vadd.f32 %v1171, %v198
        %v1175 = vand.u32 2147483647, %v1173
        %vm1176 = vcmp.le.f32.partialorder %v1175, 0.7853982
        %vm1177 = vcmp.lt.s32.totalorder %v1173, 0
        %v1178 = vand.u32 %v1173, 2139095040
        %v1179 = vshrl.u32 %v1178, 23
        %v1180 = vsub.s32 %v1179, 127
        %v1181 = vand.u32 2147483647, %v1173
        %v1182 = vand.u32 %v1181, 8388607
        %v1183 = vor.u32 %v1182, 8388608
        %v1184 = vsub.s32 0, %v1183
        %v1185 = vadd.s32 %v1180, 1
        %vm1186 = vcmp.gt.s32.totalorder %v1185, 0
        %v1187 = vsel %vm1186, %v1185, 0
        %v1188 = vshrl.u32 %v1187, 5
        %v1189 = vand.u32 %v1187, 31
        %v1190 = vsub.s32 32, %v1189
        %v1191 = vshrl.u32 683565275, %v1190
        %v1192 = vshll.u32 683565275, %v1189
        %v1193 = vshrl.u32 2475754826, %v1190
        %v1194 = vor.u32 %v1192, %v1193
        %v1195 = vshll.u32 2475754826, %v1189
        %v1196 = vshrl.u32 2131351028, %v1190
        %v1197 = vor.u32 %v1195, %v1196
        %v1198 = vshll.u32 2131351028, %v1189
        %v1199 = vshrl.u32 2102212464, %v1190
        %v1200 = vor.u32 %v1198, %v1199
        %v1201 = vshll.u32 2102212464, %v1189
        %v1202 = vshrl.u32 920167782, %v1190
        %v1203 = vor.u32 %v1201, %v1202
        %v1204 = vshll.u32 920167782, %v1189
        %v1205 = vshrl.u32 1326507024, %v1190
        %v1206 = vor.u32 %v1204, %v1205
        %vm1207 = vcmp.lt.s32.totalorder %v1188, 1
        %vm1208 = vcmp.lt.s32.totalorder %v1188, 2
        %vm1209 = vcmp.lt.s32.totalorder %v1188, 3
        %vm1210 = vcmp.lt.s32.totalorder %v1188, 4
        %v1211 = vsel %vm1207, %v1191, %v1194
        %v1212 = vsel %vm1210, %v1200, 2102212464
        %v1213 = vsel %vm1209, %v1197, %v1212
        %v1214 = vsel %vm1208, %v1211, %v1213
        %v1215 = vsel %vm1207, %v1194, %v1197
        %v1216 = vsel %vm1210, %v1203, 920167782
        %v1217 = vsel %vm1209, %v1200, %v1216
        %v1218 = vsel %vm1208, %v1215, %v1217
        %v1219 = vsel %vm1207, %v1197, %v1200
        %v1220 = vsel %vm1210, %v1206, 1326507024
        %v1221 = vsel %vm1209, %v1203, %v1220
        %v1222 = vsel %vm1208, %v1219, %v1221
        %v1223 = vshll.u32 %v1183, 8
        %v1224 = vand.u32 %v1223, 65535
        %v1225 = vshrl.u32 %v1223, 16
        %v1226 = vand.u32 %v1222, 65535
        %v1227 = vshrl.u32 %v1222, 16
        %v1228 = vmul.u32 %v1224, %v1226
        %v1229 = vmul.u32 %v1224, %v1227
        %v1230 = vmul.u32 %v1225, %v1226
        %v1231 = vmul.u32 %v1225, %v1227
        %v1232 = vshll.u32 %v1229, 16
        %v1233 = vshrl.u32 %v1229, 16
        %v1234 = vshll.u32 %v1230, 16
        %v1235 = vshrl.u32 %v1230, 16
        %vm1236 = vc.u32 %v1228, %v1232
        %v1237 = vsel %vm1236, 1, 0
        %v1238 = vadd.s32 %v1228, %v1232
        %v1239 = vadd.s32 %v1231, %v1237
        %vm1240 = vc.u32 %v1238, %v1234
        %v1241 = vsel %vm1240, 1, 0
        %v1242 = vadd.s32 %v1238, %v1234
        %v1243 = vadd.s32 %v1239, %v1241
        %v1244 = vadd.s32 %v1243, %v1233
        %v1245 = vadd.s32 %v1244, %v1235
        %v1246 = vand.u32 %v1223, 65535
        %v1247 = vshrl.u32 %v1223, 16
        %v1248 = vand.u32 %v1218, 65535
        %v1249 = vshrl.u32 %v1218, 16
        %v1250 = vmul.u32 %v1246, %v1248
        %v1251 = vmul.u32 %v1246, %v1249
        %v1252 = vmul.u32 %v1247, %v1248
        %v1253 = vmul.u32 %v1247, %v1249
        %v1254 = vshll.u32 %v1251, 16
        %v1255 = vshrl.u32 %v1251, 16
        %v1256 = vshll.u32 %v1252, 16
        %v1257 = vshrl.u32 %v1252, 16
        %vm1258 = vc.u32 %v1250, %v1254
        %v1259 = vsel %vm1258, 1, 0
        %v1260 = vadd.s32 %v1250, %v1254
        %v1261 = vadd.s32 %v1253, %v1259
        %vm1262 = vc.u32 %v1260, %v1256
        %v1263 = vsel %vm1262, 1, 0
        %v1264 = vadd.s32 %v1260, %v1256
        %v1265 = vadd.s32 %v1261, %v1263
        %v1266 = vadd.s32 %v1265, %v1255
        %v1267 = vadd.s32 %v1266, %v1257
        %v1268 = vmul.u32 %v1223, %v1214
        %v1269 = vadd.s32 %v1245, %v1264
        %vm1270 = vc.u32 %v1245, %v1264
        %v1271 = vadd.s32 %v1267, 1
        %v1272 = vsel %vm1270, %v1271, %v1267
        %v1273 = vadd.s32 %v1268, %v1272
        %v1274 = vadd.s32 %v1273, 536870912
        %v1275 = vshrl.u32 %v1274, 30
        %v1276 = vshll.u32 %v1275, 30
        %v1277 = vsub.s32 %v1273, %v1276
        %vm1278 = vcmp.lt.s32.totalorder %v1277, 0
        %v1279 = vsub.s32 0, %v1277
        %v1280 = vsel %vm1278, %v1279, %v1277
        %v1281 = vclz %v1280
        %v1282 = vsub.s32 %v1281, 2
        %vm1283 = vcmp.gt.s32.totalorder 0, %v1282
        %v1284 = vsel %vm1283, 0, %v1282
        %v1285 = vsub.s32 32, %v1284
        %v1286 = vshll.u32 %v1277, %v1284
        %v1287 = vshrl.u32 %v1269, %v1285
        %v1288 = vor.u32 %v1286, %v1287
        %v1289 = vsub.s32 4294967266, %v1284
        %v1290 = vadd.s32 %v1289, 127
        %v1291 = vshll.u32 %v1290, 23
        %v1292 = vor.u32 4788187, %v1291
        %v1293 = vand.u32 2147483647, %v1292
        %v1295 = vcvt.s32.f32 %v1288
        %v1296 = vmul.f32 %v1295, %v1293
        %v1297 = vxor.u32 %v1296, 2147483648
        %v1298 = vsel %vm1177, %v1297, %v1296
        %v1299 = vsub.s32 4, %v1275
        %v1300 = vsel %vm1177, %v1299, %v1275
        %v1301 = vsel %vm1176, %v1173, %v1298
        %v1302 = vsel %vm1176, 0, %v1300
        %v1303 = vmul.f32 %v1301, %v1301
        %v1304 = vmul.f32 %v1303, -0.001358992
        %v1305 = vadd.f32 %v1304, 0.041655596
        %v1306 = vmul.f32 %v1303, %v1305
        %v1307 = vadd.f32 %v1306, -0.4999988
        %v1308 = vmul.f32 %v1303, %v1307
        %v1309 = vadd.f32 1.0, %v1308
        %v1310 = vmul.f32 %v1301, %v1301
        %v1311 = vmul.f32 %v1310, -0.00019511016
        %v1312 = vadd.f32 %v1311, 0.008332121
        %v1313 = vmul.f32 %v1310, %v1312
        %v1314 = vadd.f32 %v1313, -0.16666654
        %v1315 = vmul.f32 %v1310, %v1314
        %v1316 = vadd.f32 %v1315, 1.0
        %v1317 = vmul.f32 %v1316, %v1301
        %vm1318 = vweird.f32 %v1173
        %v1319 = vadd.s32 %v1302, 3
        %v1320 = vand.u32 %v1319, 3
        %vm1321 = vcmp.lt.s32.totalorder %v1320, 2
        %vm1322 = vcmp.eq.s32.totalorder %v1320, 0
        %v1323 = vxor.u32 %v1317, 2147483648
        %v1324 = vsel %vm1322, %v1309, %v1323
        %vm1325 = vcmp.eq.s32.totalorder %v1320, 2
        %v1326 = vxor.u32 %v1309, 2147483648
        %v1327 = vsel %vm1325, %v1326, %v1317
        %v1328 = vsel %vm1321, %v1324, %v1327
        %v1329 = vsel %vm1318, nan, %v1328
        %v1330 = vand.u32 2147483647, %v1174
        %vm1331 = vcmp.le.f32.partialorder %v1330, 0.7853982
        %vm1332 = vcmp.lt.s32.totalorder %v1174, 0
        %v1333 = vand.u32 %v1174, 2139095040
        %v1334 = vshrl.u32 %v1333, 23
        %v1335 = vsub.s32 %v1334, 127
        %v1336 = vand.u32 2147483647, %v1174
        %v1337 = vand.u32 %v1336, 8388607
        %v1338 = vor.u32 %v1337, 8388608
        %v1339 = vsub.s32 0, %v1338
        %v1340 = vadd.s32 %v1335, 1
        %vm1341 = vcmp.gt.s32.totalorder %v1340, 0
        %v1342 = vsel %vm1341, %v1340, 0
        %v1343 = vshrl.u32 %v1342, 5
        %v1344 = vand.u32 %v1342, 31
        %v1345 = vsub.s32 32, %v1344
        %v1346 = vshrl.u32 683565275, %v1345
        %v1347 = vshll.u32 683565275, %v1344
        %v1348 = vshrl.u32 2475754826, %v1345
        %v1349 = vor.u32 %v1347, %v1348
        %v1350 = vshll.u32 2475754826, %v1344
        %v1351 = vshrl.u32 2131351028, %v1345
        %v1352 = vor.u32 %v1350, %v1351
        %v1353 = vshll.u32 2131351028, %v1344
        %v1354 = vshrl.u32 2102212464, %v1345
        %v1355 = vor.u32 %v1353, %v1354
        %v1356 = vshll.u32 2102212464, %v1344
        %v1357 = vshrl.u32 920167782, %v1345
        %v1358 = vor.u32 %v1356, %v1357
        %v1359 = vshll.u32 920167782, %v1344
        %v1360 = vshrl.u32 1326507024, %v1345
        %v1361 = vor.u32 %v1359, %v1360
        %vm1362 = vcmp.lt.s32.totalorder %v1343, 1
        %vm1363 = vcmp.lt.s32.totalorder %v1343, 2
        %vm1364 = vcmp.lt.s32.totalorder %v1343, 3
        %vm1365 = vcmp.lt.s32.totalorder %v1343, 4
        %v1366 = vsel %vm1362, %v1346, %v1349
        %v1367 = vsel %vm1365, %v1355, 2102212464
        %v1368 = vsel %vm1364, %v1352, %v1367
        %v1369 = vsel %vm1363, %v1366, %v1368
        %v1370 = vsel %vm1362, %v1349, %v1352
        %v1371 = vsel %vm1365, %v1358, 920167782
        %v1372 = vsel %vm1364, %v1355, %v1371
        %v1373 = vsel %vm1363, %v1370, %v1372
        %v1374 = vsel %vm1362, %v1352, %v1355
        %v1375 = vsel %vm1365, %v1361, 1326507024
        %v1376 = vsel %vm1364, %v1358, %v1375
        %v1377 = vsel %vm1363, %v1374, %v1376
        %v1378 = vshll.u32 %v1338, 8
        %v1379 = vand.u32 %v1378, 65535
        %v1380 = vshrl.u32 %v1378, 16
        %v1381 = vand.u32 %v1377, 65535
        %v1382 = vshrl.u32 %v1377, 16
        %v1383 = vmul.u32 %v1379, %v1381
        %v1384 = vmul.u32 %v1379, %v1382
        %v1385 = vmul.u32 %v1380, %v1381
        %v1386 = vmul.u32 %v1380, %v1382
        %v1387 = vshll.u32 %v1384, 16
        %v1388 = vshrl.u32 %v1384, 16
        %v1389 = vshll.u32 %v1385, 16
        %v1390 = vshrl.u32 %v1385, 16
        %vm1391 = vc.u32 %v1383, %v1387
        %v1392 = vsel %vm1391, 1, 0
        %v1393 = vadd.s32 %v1383, %v1387
        %v1394 = vadd.s32 %v1386, %v1392
        %vm1395 = vc.u32 %v1393, %v1389
        %v1396 = vsel %vm1395, 1, 0
        %v1397 = vadd.s32 %v1393, %v1389
        %v1398 = vadd.s32 %v1394, %v1396
        %v1399 = vadd.s32 %v1398, %v1388
        %v1400 = vadd.s32 %v1399, %v1390
        %v1401 = vand.u32 %v1378, 65535
        %v1402 = vshrl.u32 %v1378, 16
        %v1403 = vand.u32 %v1373, 65535
        %v1404 = vshrl.u32 %v1373, 16
        %v1405 = vmul.u32 %v1401, %v1403
        %v1406 = vmul.u32 %v1401, %v1404
        %v1407 = vmul.u32 %v1402, %v1403
        %v1408 = vmul.u32 %v1402, %v1404
        %v1409 = vshll.u32 %v1406, 16
        %v1410 = vshrl.u32 %v1406, 16
        %v1411 = vshll.u32 %v1407, 16
        %v1412 = vshrl.u32 %v1407, 16
        %vm1413 = vc.u32 %v1405, %v1409
        %v1414 = vsel %vm1413, 1, 0
        %v1415 = vadd.s32 %v1405, %v1409
        %v1416 = vadd.s32 %v1408, %v1414
        %vm1417 = vc.u32 %v1415, %v1411
        %v1418 = vsel %vm1417, 1, 0
        %v1419 = vadd.s32 %v1415, %v1411
        %v1420 = vadd.s32 %v1416, %v1418
        %v1421 = vadd.s32 %v1420, %v1410
        %v1422 = vadd.s32 %v1421, %v1412
        %v1423 = vmul.u32 %v1378, %v1369
        %v1424 = vadd.s32 %v1400, %v1419
        %vm1425 = vc.u32 %v1400, %v1419
        %v1426 = vadd.s32 %v1422, 1
        %v1427 = vsel %vm1425, %v1426, %v1422
        %v1428 = vadd.s32 %v1423, %v1427
        %v1429 = vadd.s32 %v1428, 536870912
        %v1430 = vshrl.u32 %v1429, 30
        %v1431 = vshll.u32 %v1430, 30
        %v1432 = vsub.s32 %v1428, %v1431
        %vm1433 = vcmp.lt.s32.totalorder %v1432, 0
        %v1434 = vsub.s32 0, %v1432
        %v1435 = vsel %vm1433, %v1434, %v1432
        %v1436 = vclz %v1435
        %v1437 = vsub.s32 %v1436, 2
        %vm1438 = vcmp.gt.s32.totalorder 0, %v1437
        %v1439 = vsel %vm1438, 0, %v1437
        %v1440 = vsub.s32 32, %v1439
        %v1441 = vshll.u32 %v1432, %v1439
        %v1442 = vshrl.u32 %v1424, %v1440
        %v1443 = vor.u32 %v1441, %v1442
        %v1444 = vsub.s32 4294967266, %v1439
        %v1445 = vadd.s32 %v1444, 127
        %v1446 = vshll.u32 %v1445, 23
        %v1447 = vor.u32 4788187, %v1446
        %v1448 = vand.u32 2147483647, %v1447
        %v1450 = vcvt.s32.f32 %v1443
        %v1451 = vmul.f32 %v1450, %v1448
        %v1452 = vxor.u32 %v1451, 2147483648
        %v1453 = vsel %vm1332, %v1452, %v1451
        %v1454 = vsub.s32 4, %v1430
        %v1455 = vsel %vm1332, %v1454, %v1430
        %v1456 = vsel %vm1331, %v1174, %v1453
        %v1457 = vsel %vm1331, 0, %v1455
        %v1458 = vmul.f32 %v1456, %v1456
        %v1459 = vmul.f32 %v1458, -0.001358992
        %v1460 = vadd.f32 %v1459, 0.041655596
        %v1461 = vmul.f32 %v1458, %v1460
        %v1462 = vadd.f32 %v1461, -0.4999988
        %v1463 = vmul.f32 %v1458, %v1462
        %v1464 = vadd.f32 1.0, %v1463
        %v1465 = vmul.f32 %v1456, %v1456
        %v1466 = vmul.f32 %v1465, -0.00019511016
        %v1467 = vadd.f32 %v1466, 0.008332121
        %v1468 = vmul.f32 %v1465, %v1467
        %v1469 = vadd.f32 %v1468, -0.16666654
        %v1470 = vmul.f32 %v1465, %v1469
        %v1471 = vadd.f32 %v1470, 1.0
        %v1472 = vmul.f32 %v1471, %v1456
        %vm1473 = vweird.f32 %v1174
        %v1474 = vadd.s32 %v1457, 3
        %v1475 = vand.u32 %v1474, 3
        %vm1476 = vcmp.lt.s32.totalorder %v1475, 2
        %vm1477 = vcmp.eq.s32.totalorder %v1475, 0
        %v1478 = vxor.u32 %v1472, 2147483648
        %v1479 = vsel %vm1477, %v1464, %v1478
        %vm1480 = vcmp.eq.s32.totalorder %v1475, 2
        %v1481 = vxor.u32 %v1464, 2147483648
        %v1482 = vsel %vm1480, %v1481, %v1472
        %v1483 = vsel %vm1476, %v1479, %v1482
        %v1484 = vsel %vm1473, nan, %v1483
        %s1485 = scalar_lea.vmem %s178, 48 [#allocation7]
        %1486 = vst [vmem:[%s1485] sm:$0xff] %v1329
        %1487 = vst [vmem:[%s1485 + $0x8] sm:$0xff] %v1484
        %s1488 = sadd.s32 %s200, 5
        %s1489 = scvt.s32.f32 %s1488
        %v1490 = vstv %s1489
        %v1491 = vmul.f32 %v1490, %v199
        %v1493 = vperm.slane %v1491, 0
        %v1495 = vadd.f32 %v1493, %v197
        %v1496 = vadd.f32 %v1493, %v198
        %v1497 = vand.u32 2147483647, %v1495
        %vm1498 = vcmp.le.f32.partialorder %v1497, 0.7853982
        %vm1499 = vcmp.lt.s32.totalorder %v1495, 0
        %v1500 = vand.u32 %v1495, 2139095040
        %v1501 = vshrl.u32 %v1500, 23
        %v1502 = vsub.s32 %v1501, 127
        %v1503 = vand.u32 2147483647, %v1495
        %v1504 = vand.u32 %v1503, 8388607
        %v1505 = vor.u32 %v1504, 8388608
        %v1506 = vsub.s32 0, %v1505
        %v1507 = vadd.s32 %v1502, 1
        %vm1508 = vcmp.gt.s32.totalorder %v1507, 0
        %v1509 = vsel %vm1508, %v1507, 0
        %v1510 = vshrl.u32 %v1509, 5
        %v1511 = vand.u32 %v1509, 31
        %v1512 = vsub.s32 32, %v1511
        %v1513 = vshrl.u32 683565275, %v1512
        %v1514 = vshll.u32 683565275, %v1511
        %v1515 = vshrl.u32 2475754826, %v1512
        %v1516 = vor.u32 %v1514, %v1515
        %v1517 = vshll.u32 2475754826, %v1511
        %v1518 = vshrl.u32 2131351028, %v1512
        %v1519 = vor.u32 %v1517, %v1518
        %v1520 = vshll.u32 2131351028, %v1511
        %v1521 = vshrl.u32 2102212464, %v1512
        %v1522 = vor.u32 %v1520, %v1521
        %v1523 = vshll.u32 2102212464, %v1511
        %v1524 = vshrl.u32 920167782, %v1512
        %v1525 = vor.u32 %v1523, %v1524
        %v1526 = vshll.u32 920167782, %v1511
        %v1527 = vshrl.u32 1326507024, %v1512
        %v1528 = vor.u32 %v1526, %v1527
        %vm1529 = vcmp.lt.s32.totalorder %v1510, 1
        %vm1530 = vcmp.lt.s32.totalorder %v1510, 2
        %vm1531 = vcmp.lt.s32.totalorder %v1510, 3
        %vm1532 = vcmp.lt.s32.totalorder %v1510, 4
        %v1533 = vsel %vm1529, %v1513, %v1516
        %v1534 = vsel %vm1532, %v1522, 2102212464
        %v1535 = vsel %vm1531, %v1519, %v1534
        %v1536 = vsel %vm1530, %v1533, %v1535
        %v1537 = vsel %vm1529, %v1516, %v1519
        %v1538 = vsel %vm1532, %v1525, 920167782
        %v1539 = vsel %vm1531, %v1522, %v1538
        %v1540 = vsel %vm1530, %v1537, %v1539
        %v1541 = vsel %vm1529, %v1519, %v1522
        %v1542 = vsel %vm1532, %v1528, 1326507024
        %v1543 = vsel %vm1531, %v1525, %v1542
        %v1544 = vsel %vm1530, %v1541, %v1543
        %v1545 = vshll.u32 %v1505, 8
        %v1546 = vand.u32 %v1545, 65535
        %v1547 = vshrl.u32 %v1545, 16
        %v1548 = vand.u32 %v1544, 65535
        %v1549 = vshrl.u32 %v1544, 16
        %v1550 = vmul.u32 %v1546, %v1548
        %v1551 = vmul.u32 %v1546, %v1549
        %v1552 = vmul.u32 %v1547, %v1548
        %v1553 = vmul.u32 %v1547, %v1549
        %v1554 = vshll.u32 %v1551, 16
        %v1555 = vshrl.u32 %v1551, 16
        %v1556 = vshll.u32 %v1552, 16
        %v1557 = vshrl.u32 %v1552, 16
        %vm1558 = vc.u32 %v1550, %v1554
        %v1559 = vsel %vm1558, 1, 0
        %v1560 = vadd.s32 %v1550, %v1554
        %v1561 = vadd.s32 %v1553, %v1559
        %vm1562 = vc.u32 %v1560, %v1556
        %v1563 = vsel %vm1562, 1, 0
        %v1564 = vadd.s32 %v1560, %v1556
        %v1565 = vadd.s32 %v1561, %v1563
        %v1566 = vadd.s32 %v1565, %v1555
        %v1567 = vadd.s32 %v1566, %v1557
        %v1568 = vand.u32 %v1545, 65535
        %v1569 = vshrl.u32 %v1545, 16
        %v1570 = vand.u32 %v1540, 65535
        %v1571 = vshrl.u32 %v1540, 16
        %v1572 = vmul.u32 %v1568, %v1570
        %v1573 = vmul.u32 %v1568, %v1571
        %v1574 = vmul.u32 %v1569, %v1570
        %v1575 = vmul.u32 %v1569, %v1571
        %v1576 = vshll.u32 %v1573, 16
        %v1577 = vshrl.u32 %v1573, 16
        %v1578 = vshll.u32 %v1574, 16
        %v1579 = vshrl.u32 %v1574, 16
        %vm1580 = vc.u32 %v1572, %v1576
        %v1581 = vsel %vm1580, 1, 0
        %v1582 = vadd.s32 %v1572, %v1576
        %v1583 = vadd.s32 %v1575, %v1581
        %vm1584 = vc.u32 %v1582, %v1578
        %v1585 = vsel %vm1584, 1, 0
        %v1586 = vadd.s32 %v1582, %v1578
        %v1587 = vadd.s32 %v1583, %v1585
        %v1588 = vadd.s32 %v1587, %v1577
        %v1589 = vadd.s32 %v1588, %v1579
        %v1590 = vmul.u32 %v1545, %v1536
        %v1591 = vadd.s32 %v1567, %v1586
        %vm1592 = vc.u32 %v1567, %v1586
        %v1593 = vadd.s32 %v1589, 1
        %v1594 = vsel %vm1592, %v1593, %v1589
        %v1595 = vadd.s32 %v1590, %v1594
        %v1596 = vadd.s32 %v1595, 536870912
        %v1597 = vshrl.u32 %v1596, 30
        %v1598 = vshll.u32 %v1597, 30
        %v1599 = vsub.s32 %v1595, %v1598
        %vm1600 = vcmp.lt.s32.totalorder %v1599, 0
        %v1601 = vsub.s32 0, %v1599
        %v1602 = vsel %vm1600, %v1601, %v1599
        %v1603 = vclz %v1602
        %v1604 = vsub.s32 %v1603, 2
        %vm1605 = vcmp.gt.s32.totalorder 0, %v1604
        %v1606 = vsel %vm1605, 0, %v1604
        %v1607 = vsub.s32 32, %v1606
        %v1608 = vshll.u32 %v1599, %v1606
        %v1609 = vshrl.u32 %v1591, %v1607
        %v1610 = vor.u32 %v1608, %v1609
        %v1611 = vsub.s32 4294967266, %v1606
        %v1612 = vadd.s32 %v1611, 127
        %v1613 = vshll.u32 %v1612, 23
        %v1614 = vor.u32 4788187, %v1613
        %v1615 = vand.u32 2147483647, %v1614
        %v1617 = vcvt.s32.f32 %v1610
        %v1618 = vmul.f32 %v1617, %v1615
        %v1619 = vxor.u32 %v1618, 2147483648
        %v1620 = vsel %vm1499, %v1619, %v1618
        %v1621 = vsub.s32 4, %v1597
        %v1622 = vsel %vm1499, %v1621, %v1597
        %v1623 = vsel %vm1498, %v1495, %v1620
        %v1624 = vsel %vm1498, 0, %v1622
        %v1625 = vmul.f32 %v1623, %v1623
        %v1626 = vmul.f32 %v1625, -0.001358992
        %v1627 = vadd.f32 %v1626, 0.041655596
        %v1628 = vmul.f32 %v1625, %v1627
        %v1629 = vadd.f32 %v1628, -0.4999988
        %v1630 = vmul.f32 %v1625, %v1629
        %v1631 = vadd.f32 1.0, %v1630
        %v1632 = vmul.f32 %v1623, %v1623
        %v1633 = vmul.f32 %v1632, -0.00019511016
        %v1634 = vadd.f32 %v1633, 0.008332121
        %v1635 = vmul.f32 %v1632, %v1634
        %v1636 = vadd.f32 %v1635, -0.16666654
        %v1637 = vmul.f32 %v1632, %v1636
        %v1638 = vadd.f32 %v1637, 1.0
        %v1639 = vmul.f32 %v1638, %v1623
        %vm1640 = vweird.f32 %v1495
        %v1641 = vadd.s32 %v1624, 3
        %v1642 = vand.u32 %v1641, 3
        %vm1643 = vcmp.lt.s32.totalorder %v1642, 2
        %vm1644 = vcmp.eq.s32.totalorder %v1642, 0
        %v1645 = vxor.u32 %v1639, 2147483648
        %v1646 = vsel %vm1644, %v1631, %v1645
        %vm1647 = vcmp.eq.s32.totalorder %v1642, 2
        %v1648 = vxor.u32 %v1631, 2147483648
        %v1649 = vsel %vm1647, %v1648, %v1639
        %v1650 = vsel %vm1643, %v1646, %v1649
        %v1651 = vsel %vm1640, nan, %v1650
        %v1652 = vand.u32 2147483647, %v1496
        %vm1653 = vcmp.le.f32.partialorder %v1652, 0.7853982
        %vm1654 = vcmp.lt.s32.totalorder %v1496, 0
        %v1655 = vand.u32 %v1496, 2139095040
        %v1656 = vshrl.u32 %v1655, 23
        %v1657 = vsub.s32 %v1656, 127
        %v1658 = vand.u32 2147483647, %v1496
        %v1659 = vand.u32 %v1658, 8388607
        %v1660 = vor.u32 %v1659, 8388608
        %v1661 = vsub.s32 0, %v1660
        %v1662 = vadd.s32 %v1657, 1
        %vm1663 = vcmp.gt.s32.totalorder %v1662, 0
        %v1664 = vsel %vm1663, %v1662, 0
        %v1665 = vshrl.u32 %v1664, 5
        %v1666 = vand.u32 %v1664, 31
        %v1667 = vsub.s32 32, %v1666
        %v1668 = vshrl.u32 683565275, %v1667
        %v1669 = vshll.u32 683565275, %v1666
        %v1670 = vshrl.u32 2475754826, %v1667
        %v1671 = vor.u32 %v1669, %v1670
        %v1672 = vshll.u32 2475754826, %v1666
        %v1673 = vshrl.u32 2131351028, %v1667
        %v1674 = vor.u32 %v1672, %v1673
        %v1675 = vshll.u32 2131351028, %v1666
        %v1676 = vshrl.u32 2102212464, %v1667
        %v1677 = vor.u32 %v1675, %v1676
        %v1678 = vshll.u32 2102212464, %v1666
        %v1679 = vshrl.u32 920167782, %v1667
        %v1680 = vor.u32 %v1678, %v1679
        %v1681 = vshll.u32 920167782, %v1666
        %v1682 = vshrl.u32 1326507024, %v1667
        %v1683 = vor.u32 %v1681, %v1682
        %vm1684 = vcmp.lt.s32.totalorder %v1665, 1
        %vm1685 = vcmp.lt.s32.totalorder %v1665, 2
        %vm1686 = vcmp.lt.s32.totalorder %v1665, 3
        %vm1687 = vcmp.lt.s32.totalorder %v1665, 4
        %v1688 = vsel %vm1684, %v1668, %v1671
        %v1689 = vsel %vm1687, %v1677, 2102212464
        %v1690 = vsel %vm1686, %v1674, %v1689
        %v1691 = vsel %vm1685, %v1688, %v1690
        %v1692 = vsel %vm1684, %v1671, %v1674
        %v1693 = vsel %vm1687, %v1680, 920167782
        %v1694 = vsel %vm1686, %v1677, %v1693
        %v1695 = vsel %vm1685, %v1692, %v1694
        %v1696 = vsel %vm1684, %v1674, %v1677
        %v1697 = vsel %vm1687, %v1683, 1326507024
        %v1698 = vsel %vm1686, %v1680, %v1697
        %v1699 = vsel %vm1685, %v1696, %v1698
        %v1700 = vshll.u32 %v1660, 8
        %v1701 = vand.u32 %v1700, 65535
        %v1702 = vshrl.u32 %v1700, 16
        %v1703 = vand.u32 %v1699, 65535
        %v1704 = vshrl.u32 %v1699, 16
        %v1705 = vmul.u32 %v1701, %v1703
        %v1706 = vmul.u32 %v1701, %v1704
        %v1707 = vmul.u32 %v1702, %v1703
        %v1708 = vmul.u32 %v1702, %v1704
        %v1709 = vshll.u32 %v1706, 16
        %v1710 = vshrl.u32 %v1706, 16
        %v1711 = vshll.u32 %v1707, 16
        %v1712 = vshrl.u32 %v1707, 16
        %vm1713 = vc.u32 %v1705, %v1709
        %v1714 = vsel %vm1713, 1, 0
        %v1715 = vadd.s32 %v1705, %v1709
        %v1716 = vadd.s32 %v1708, %v1714
        %vm1717 = vc.u32 %v1715, %v1711
        %v1718 = vsel %vm1717, 1, 0
        %v1719 = vadd.s32 %v1715, %v1711
        %v1720 = vadd.s32 %v1716, %v1718
        %v1721 = vadd.s32 %v1720, %v1710
        %v1722 = vadd.s32 %v1721, %v1712
        %v1723 = vand.u32 %v1700, 65535
        %v1724 = vshrl.u32 %v1700, 16
        %v1725 = vand.u32 %v1695, 65535
        %v1726 = vshrl.u32 %v1695, 16
        %v1727 = vmul.u32 %v1723, %v1725
        %v1728 = vmul.u32 %v1723, %v1726
        %v1729 = vmul.u32 %v1724, %v1725
        %v1730 = vmul.u32 %v1724, %v1726
        %v1731 = vshll.u32 %v1728, 16
        %v1732 = vshrl.u32 %v1728, 16
        %v1733 = vshll.u32 %v1729, 16
        %v1734 = vshrl.u32 %v1729, 16
        %vm1735 = vc.u32 %v1727, %v1731
        %v1736 = vsel %vm1735, 1, 0
        %v1737 = vadd.s32 %v1727, %v1731
        %v1738 = vadd.s32 %v1730, %v1736
        %vm1739 = vc.u32 %v1737, %v1733
        %v1740 = vsel %vm1739, 1, 0
        %v1741 = vadd.s32 %v1737, %v1733
        %v1742 = vadd.s32 %v1738, %v1740
        %v1743 = vadd.s32 %v1742, %v1732
        %v1744 = vadd.s32 %v1743, %v1734
        %v1745 = vmul.u32 %v1700, %v1691
        %v1746 = vadd.s32 %v1722, %v1741
        %vm1747 = vc.u32 %v1722, %v1741
        %v1748 = vadd.s32 %v1744, 1
        %v1749 = vsel %vm1747, %v1748, %v1744
        %v1750 = vadd.s32 %v1745, %v1749
        %v1751 = vadd.s32 %v1750, 536870912
        %v1752 = vshrl.u32 %v1751, 30
        %v1753 = vshll.u32 %v1752, 30
        %v1754 = vsub.s32 %v1750, %v1753
        %vm1755 = vcmp.lt.s32.totalorder %v1754, 0
        %v1756 = vsub.s32 0, %v1754
        %v1757 = vsel %vm1755, %v1756, %v1754
        %v1758 = vclz %v1757
        %v1759 = vsub.s32 %v1758, 2
        %vm1760 = vcmp.gt.s32.totalorder 0, %v1759
        %v1761 = vsel %vm1760, 0, %v1759
        %v1762 = vsub.s32 32, %v1761
        %v1763 = vshll.u32 %v1754, %v1761
        %v1764 = vshrl.u32 %v1746, %v1762
        %v1765 = vor.u32 %v1763, %v1764
        %v1766 = vsub.s32 4294967266, %v1761
        %v1767 = vadd.s32 %v1766, 127
        %v1768 = vshll.u32 %v1767, 23
        %v1769 = vor.u32 4788187, %v1768
        %v1770 = vand.u32 2147483647, %v1769
        %v1772 = vcvt.s32.f32 %v1765
        %v1773 = vmul.f32 %v1772, %v1770
        %v1774 = vxor.u32 %v1773, 2147483648
        %v1775 = vsel %vm1654, %v1774, %v1773
        %v1776 = vsub.s32 4, %v1752
        %v1777 = vsel %vm1654, %v1776, %v1752
        %v1778 = vsel %vm1653, %v1496, %v1775
        %v1779 = vsel %vm1653, 0, %v1777
        %v1780 = vmul.f32 %v1778, %v1778
        %v1781 = vmul.f32 %v1780, -0.001358992
        %v1782 = vadd.f32 %v1781, 0.041655596
        %v1783 = vmul.f32 %v1780, %v1782
        %v1784 = vadd.f32 %v1783, -0.4999988
        %v1785 = vmul.f32 %v1780, %v1784
        %v1786 = vadd.f32 1.0, %v1785
        %v1787 = vmul.f32 %v1778, %v1778
        %v1788 = vmul.f32 %v1787, -0.00019511016
        %v1789 = vadd.f32 %v1788, 0.008332121
        %v1790 = vmul.f32 %v1787, %v1789
        %v1791 = vadd.f32 %v1790, -0.16666654
        %v1792 = vmul.f32 %v1787, %v1791
        %v1793 = vadd.f32 %v1792, 1.0
        %v1794 = vmul.f32 %v1793, %v1778
        %vm1795 = vweird.f32 %v1496
        %v1796 = vadd.s32 %v1779, 3
        %v1797 = vand.u32 %v1796, 3
        %vm1798 = vcmp.lt.s32.totalorder %v1797, 2
        %vm1799 = vcmp.eq.s32.totalorder %v1797, 0
        %v1800 = vxor.u32 %v1794, 2147483648
        %v1801 = vsel %vm1799, %v1786, %v1800
        %vm1802 = vcmp.eq.s32.totalorder %v1797, 2
        %v1803 = vxor.u32 %v1786, 2147483648
        %v1804 = vsel %vm1802, %v1803, %v1794
        %v1805 = vsel %vm1798, %v1801, %v1804
        %v1806 = vsel %vm1795, nan, %v1805
        %s1807 = scalar_lea.vmem %s178, 64 [#allocation7]
        %1808 = vst [vmem:[%s1807] sm:$0xff] %v1651
        %1809 = vst [vmem:[%s1807 + $0x8] sm:$0xff] %v1806
        %s1810 = sadd.s32 %s200, 6
        %s1811 = scvt.s32.f32 %s1810
        %v1812 = vstv %s1811
        %v1813 = vmul.f32 %v1812, %v199
        %v1815 = vperm.slane %v1813, 0
        %v1817 = vadd.f32 %v1815, %v197
        %v1818 = vadd.f32 %v1815, %v198
        %v1819 = vand.u32 2147483647, %v1817
        %vm1820 = vcmp.le.f32.partialorder %v1819, 0.7853982
        %vm1821 = vcmp.lt.s32.totalorder %v1817, 0
        %v1822 = vand.u32 %v1817, 2139095040
        %v1823 = vshrl.u32 %v1822, 23
        %v1824 = vsub.s32 %v1823, 127
        %v1825 = vand.u32 2147483647, %v1817
        %v1826 = vand.u32 %v1825, 8388607
        %v1827 = vor.u32 %v1826, 8388608
        %v1828 = vsub.s32 0, %v1827
        %v1829 = vadd.s32 %v1824, 1
        %vm1830 = vcmp.gt.s32.totalorder %v1829, 0
        %v1831 = vsel %vm1830, %v1829, 0
        %v1832 = vshrl.u32 %v1831, 5
        %v1833 = vand.u32 %v1831, 31
        %v1834 = vsub.s32 32, %v1833
        %v1835 = vshrl.u32 683565275, %v1834
        %v1836 = vshll.u32 683565275, %v1833
        %v1837 = vshrl.u32 2475754826, %v1834
        %v1838 = vor.u32 %v1836, %v1837
        %v1839 = vshll.u32 2475754826, %v1833
        %v1840 = vshrl.u32 2131351028, %v1834
        %v1841 = vor.u32 %v1839, %v1840
        %v1842 = vshll.u32 2131351028, %v1833
        %v1843 = vshrl.u32 2102212464, %v1834
        %v1844 = vor.u32 %v1842, %v1843
        %v1845 = vshll.u32 2102212464, %v1833
        %v1846 = vshrl.u32 920167782, %v1834
        %v1847 = vor.u32 %v1845, %v1846
        %v1848 = vshll.u32 920167782, %v1833
        %v1849 = vshrl.u32 1326507024, %v1834
        %v1850 = vor.u32 %v1848, %v1849
        %vm1851 = vcmp.lt.s32.totalorder %v1832, 1
        %vm1852 = vcmp.lt.s32.totalorder %v1832, 2
        %vm1853 = vcmp.lt.s32.totalorder %v1832, 3
        %vm1854 = vcmp.lt.s32.totalorder %v1832, 4
        %v1855 = vsel %vm1851, %v1835, %v1838
        %v1856 = vsel %vm1854, %v1844, 2102212464
        %v1857 = vsel %vm1853, %v1841, %v1856
        %v1858 = vsel %vm1852, %v1855, %v1857
        %v1859 = vsel %vm1851, %v1838, %v1841
        %v1860 = vsel %vm1854, %v1847, 920167782
        %v1861 = vsel %vm1853, %v1844, %v1860
        %v1862 = vsel %vm1852, %v1859, %v1861
        %v1863 = vsel %vm1851, %v1841, %v1844
        %v1864 = vsel %vm1854, %v1850, 1326507024
        %v1865 = vsel %vm1853, %v1847, %v1864
        %v1866 = vsel %vm1852, %v1863, %v1865
        %v1867 = vshll.u32 %v1827, 8
        %v1868 = vand.u32 %v1867, 65535
        %v1869 = vshrl.u32 %v1867, 16
        %v1870 = vand.u32 %v1866, 65535
        %v1871 = vshrl.u32 %v1866, 16
        %v1872 = vmul.u32 %v1868, %v1870
        %v1873 = vmul.u32 %v1868, %v1871
        %v1874 = vmul.u32 %v1869, %v1870
        %v1875 = vmul.u32 %v1869, %v1871
        %v1876 = vshll.u32 %v1873, 16
        %v1877 = vshrl.u32 %v1873, 16
        %v1878 = vshll.u32 %v1874, 16
        %v1879 = vshrl.u32 %v1874, 16
        %vm1880 = vc.u32 %v1872, %v1876
        %v1881 = vsel %vm1880, 1, 0
        %v1882 = vadd.s32 %v1872, %v1876
        %v1883 = vadd.s32 %v1875, %v1881
        %vm1884 = vc.u32 %v1882, %v1878
        %v1885 = vsel %vm1884, 1, 0
        %v1886 = vadd.s32 %v1882, %v1878
        %v1887 = vadd.s32 %v1883, %v1885
        %v1888 = vadd.s32 %v1887, %v1877
        %v1889 = vadd.s32 %v1888, %v1879
        %v1890 = vand.u32 %v1867, 65535
        %v1891 = vshrl.u32 %v1867, 16
        %v1892 = vand.u32 %v1862, 65535
        %v1893 = vshrl.u32 %v1862, 16
        %v1894 = vmul.u32 %v1890, %v1892
        %v1895 = vmul.u32 %v1890, %v1893
        %v1896 = vmul.u32 %v1891, %v1892
        %v1897 = vmul.u32 %v1891, %v1893
        %v1898 = vshll.u32 %v1895, 16
        %v1899 = vshrl.u32 %v1895, 16
        %v1900 = vshll.u32 %v1896, 16
        %v1901 = vshrl.u32 %v1896, 16
        %vm1902 = vc.u32 %v1894, %v1898
        %v1903 = vsel %vm1902, 1, 0
        %v1904 = vadd.s32 %v1894, %v1898
        %v1905 = vadd.s32 %v1897, %v1903
        %vm1906 = vc.u32 %v1904, %v1900
        %v1907 = vsel %vm1906, 1, 0
        %v1908 = vadd.s32 %v1904, %v1900
        %v1909 = vadd.s32 %v1905, %v1907
        %v1910 = vadd.s32 %v1909, %v1899
        %v1911 = vadd.s32 %v1910, %v1901
        %v1912 = vmul.u32 %v1867, %v1858
        %v1913 = vadd.s32 %v1889, %v1908
        %vm1914 = vc.u32 %v1889, %v1908
        %v1915 = vadd.s32 %v1911, 1
        %v1916 = vsel %vm1914, %v1915, %v1911
        %v1917 = vadd.s32 %v1912, %v1916
        %v1918 = vadd.s32 %v1917, 536870912
        %v1919 = vshrl.u32 %v1918, 30
        %v1920 = vshll.u32 %v1919, 30
        %v1921 = vsub.s32 %v1917, %v1920
        %vm1922 = vcmp.lt.s32.totalorder %v1921, 0
        %v1923 = vsub.s32 0, %v1921
        %v1924 = vsel %vm1922, %v1923, %v1921
        %v1925 = vclz %v1924
        %v1926 = vsub.s32 %v1925, 2
        %vm1927 = vcmp.gt.s32.totalorder 0, %v1926
        %v1928 = vsel %vm1927, 0, %v1926
        %v1929 = vsub.s32 32, %v1928
        %v1930 = vshll.u32 %v1921, %v1928
        %v1931 = vshrl.u32 %v1913, %v1929
        %v1932 = vor.u32 %v1930, %v1931
        %v1933 = vsub.s32 4294967266, %v1928
        %v1934 = vadd.s32 %v1933, 127
        %v1935 = vshll.u32 %v1934, 23
        %v1936 = vor.u32 4788187, %v1935
        %v1937 = vand.u32 2147483647, %v1936
        %v1939 = vcvt.s32.f32 %v1932
        %v1940 = vmul.f32 %v1939, %v1937
        %v1941 = vxor.u32 %v1940, 2147483648
        %v1942 = vsel %vm1821, %v1941, %v1940
        %v1943 = vsub.s32 4, %v1919
        %v1944 = vsel %vm1821, %v1943, %v1919
        %v1945 = vsel %vm1820, %v1817, %v1942
        %v1946 = vsel %vm1820, 0, %v1944
        %v1947 = vmul.f32 %v1945, %v1945
        %v1948 = vmul.f32 %v1947, -0.001358992
        %v1949 = vadd.f32 %v1948, 0.041655596
        %v1950 = vmul.f32 %v1947, %v1949
        %v1951 = vadd.f32 %v1950, -0.4999988
        %v1952 = vmul.f32 %v1947, %v1951
        %v1953 = vadd.f32 1.0, %v1952
        %v1954 = vmul.f32 %v1945, %v1945
        %v1955 = vmul.f32 %v1954, -0.00019511016
        %v1956 = vadd.f32 %v1955, 0.008332121
        %v1957 = vmul.f32 %v1954, %v1956
        %v1958 = vadd.f32 %v1957, -0.16666654
        %v1959 = vmul.f32 %v1954, %v1958
        %v1960 = vadd.f32 %v1959, 1.0
        %v1961 = vmul.f32 %v1960, %v1945
        %vm1962 = vweird.f32 %v1817
        %v1963 = vadd.s32 %v1946, 3
        %v1964 = vand.u32 %v1963, 3
        %vm1965 = vcmp.lt.s32.totalorder %v1964, 2
        %vm1966 = vcmp.eq.s32.totalorder %v1964, 0
        %v1967 = vxor.u32 %v1961, 2147483648
        %v1968 = vsel %vm1966, %v1953, %v1967
        %vm1969 = vcmp.eq.s32.totalorder %v1964, 2
        %v1970 = vxor.u32 %v1953, 2147483648
        %v1971 = vsel %vm1969, %v1970, %v1961
        %v1972 = vsel %vm1965, %v1968, %v1971
        %v1973 = vsel %vm1962, nan, %v1972
        %v1974 = vand.u32 2147483647, %v1818
        %vm1975 = vcmp.le.f32.partialorder %v1974, 0.7853982
        %vm1976 = vcmp.lt.s32.totalorder %v1818, 0
        %v1977 = vand.u32 %v1818, 2139095040
        %v1978 = vshrl.u32 %v1977, 23
        %v1979 = vsub.s32 %v1978, 127
        %v1980 = vand.u32 2147483647, %v1818
        %v1981 = vand.u32 %v1980, 8388607
        %v1982 = vor.u32 %v1981, 8388608
        %v1983 = vsub.s32 0, %v1982
        %v1984 = vadd.s32 %v1979, 1
        %vm1985 = vcmp.gt.s32.totalorder %v1984, 0
        %v1986 = vsel %vm1985, %v1984, 0
        %v1987 = vshrl.u32 %v1986, 5
        %v1988 = vand.u32 %v1986, 31
        %v1989 = vsub.s32 32, %v1988
        %v1990 = vshrl.u32 683565275, %v1989
        %v1991 = vshll.u32 683565275, %v1988
        %v1992 = vshrl.u32 2475754826, %v1989
        %v1993 = vor.u32 %v1991, %v1992
        %v1994 = vshll.u32 2475754826, %v1988
        %v1995 = vshrl.u32 2131351028, %v1989
        %v1996 = vor.u32 %v1994, %v1995
        %v1997 = vshll.u32 2131351028, %v1988
        %v1998 = vshrl.u32 2102212464, %v1989
        %v1999 = vor.u32 %v1997, %v1998
        %v2000 = vshll.u32 2102212464, %v1988
        %v2001 = vshrl.u32 920167782, %v1989
        %v2002 = vor.u32 %v2000, %v2001
        %v2003 = vshll.u32 920167782, %v1988
        %v2004 = vshrl.u32 1326507024, %v1989
        %v2005 = vor.u32 %v2003, %v2004
        %vm2006 = vcmp.lt.s32.totalorder %v1987, 1
        %vm2007 = vcmp.lt.s32.totalorder %v1987, 2
        %vm2008 = vcmp.lt.s32.totalorder %v1987, 3
        %vm2009 = vcmp.lt.s32.totalorder %v1987, 4
        %v2010 = vsel %vm2006, %v1990, %v1993
        %v2011 = vsel %vm2009, %v1999, 2102212464
        %v2012 = vsel %vm2008, %v1996, %v2011
        %v2013 = vsel %vm2007, %v2010, %v2012
        %v2014 = vsel %vm2006, %v1993, %v1996
        %v2015 = vsel %vm2009, %v2002, 920167782
        %v2016 = vsel %vm2008, %v1999, %v2015
        %v2017 = vsel %vm2007, %v2014, %v2016
        %v2018 = vsel %vm2006, %v1996, %v1999
        %v2019 = vsel %vm2009, %v2005, 1326507024
        %v2020 = vsel %vm2008, %v2002, %v2019
        %v2021 = vsel %vm2007, %v2018, %v2020
        %v2022 = vshll.u32 %v1982, 8
        %v2023 = vand.u32 %v2022, 65535
        %v2024 = vshrl.u32 %v2022, 16
        %v2025 = vand.u32 %v2021, 65535
        %v2026 = vshrl.u32 %v2021, 16
        %v2027 = vmul.u32 %v2023, %v2025
        %v2028 = vmul.u32 %v2023, %v2026
        %v2029 = vmul.u32 %v2024, %v2025
        %v2030 = vmul.u32 %v2024, %v2026
        %v2031 = vshll.u32 %v2028, 16
        %v2032 = vshrl.u32 %v2028, 16
        %v2033 = vshll.u32 %v2029, 16
        %v2034 = vshrl.u32 %v2029, 16
        %vm2035 = vc.u32 %v2027, %v2031
        %v2036 = vsel %vm2035, 1, 0
        %v2037 = vadd.s32 %v2027, %v2031
        %v2038 = vadd.s32 %v2030, %v2036
        %vm2039 = vc.u32 %v2037, %v2033
        %v2040 = vsel %vm2039, 1, 0
        %v2041 = vadd.s32 %v2037, %v2033
        %v2042 = vadd.s32 %v2038, %v2040
        %v2043 = vadd.s32 %v2042, %v2032
        %v2044 = vadd.s32 %v2043, %v2034
        %v2045 = vand.u32 %v2022, 65535
        %v2046 = vshrl.u32 %v2022, 16
        %v2047 = vand.u32 %v2017, 65535
        %v2048 = vshrl.u32 %v2017, 16
        %v2049 = vmul.u32 %v2045, %v2047
        %v2050 = vmul.u32 %v2045, %v2048
        %v2051 = vmul.u32 %v2046, %v2047
        %v2052 = vmul.u32 %v2046, %v2048
        %v2053 = vshll.u32 %v2050, 16
        %v2054 = vshrl.u32 %v2050, 16
        %v2055 = vshll.u32 %v2051, 16
        %v2056 = vshrl.u32 %v2051, 16
        %vm2057 = vc.u32 %v2049, %v2053
        %v2058 = vsel %vm2057, 1, 0
        %v2059 = vadd.s32 %v2049, %v2053
        %v2060 = vadd.s32 %v2052, %v2058
        %vm2061 = vc.u32 %v2059, %v2055
        %v2062 = vsel %vm2061, 1, 0
        %v2063 = vadd.s32 %v2059, %v2055
        %v2064 = vadd.s32 %v2060, %v2062
        %v2065 = vadd.s32 %v2064, %v2054
        %v2066 = vadd.s32 %v2065, %v2056
        %v2067 = vmul.u32 %v2022, %v2013
        %v2068 = vadd.s32 %v2044, %v2063
        %vm2069 = vc.u32 %v2044, %v2063
        %v2070 = vadd.s32 %v2066, 1
        %v2071 = vsel %vm2069, %v2070, %v2066
        %v2072 = vadd.s32 %v2067, %v2071
        %v2073 = vadd.s32 %v2072, 536870912
        %v2074 = vshrl.u32 %v2073, 30
        %v2075 = vshll.u32 %v2074, 30
        %v2076 = vsub.s32 %v2072, %v2075
        %vm2077 = vcmp.lt.s32.totalorder %v2076, 0
        %v2078 = vsub.s32 0, %v2076
        %v2079 = vsel %vm2077, %v2078, %v2076
        %v2080 = vclz %v2079
        %v2081 = vsub.s32 %v2080, 2
        %vm2082 = vcmp.gt.s32.totalorder 0, %v2081
        %v2083 = vsel %vm2082, 0, %v2081
        %v2084 = vsub.s32 32, %v2083
        %v2085 = vshll.u32 %v2076, %v2083
        %v2086 = vshrl.u32 %v2068, %v2084
        %v2087 = vor.u32 %v2085, %v2086
        %v2088 = vsub.s32 4294967266, %v2083
        %v2089 = vadd.s32 %v2088, 127
        %v2090 = vshll.u32 %v2089, 23
        %v2091 = vor.u32 4788187, %v2090
        %v2092 = vand.u32 2147483647, %v2091
        %v2094 = vcvt.s32.f32 %v2087
        %v2095 = vmul.f32 %v2094, %v2092
        %v2096 = vxor.u32 %v2095, 2147483648
        %v2097 = vsel %vm1976, %v2096, %v2095
        %v2098 = vsub.s32 4, %v2074
        %v2099 = vsel %vm1976, %v2098, %v2074
        %v2100 = vsel %vm1975, %v1818, %v2097
        %v2101 = vsel %vm1975, 0, %v2099
        %v2102 = vmul.f32 %v2100, %v2100
        %v2103 = vmul.f32 %v2102, -0.001358992
        %v2104 = vadd.f32 %v2103, 0.041655596
        %v2105 = vmul.f32 %v2102, %v2104
        %v2106 = vadd.f32 %v2105, -0.4999988
        %v2107 = vmul.f32 %v2102, %v2106
        %v2108 = vadd.f32 1.0, %v2107
        %v2109 = vmul.f32 %v2100, %v2100
        %v2110 = vmul.f32 %v2109, -0.00019511016
        %v2111 = vadd.f32 %v2110, 0.008332121
        %v2112 = vmul.f32 %v2109, %v2111
        %v2113 = vadd.f32 %v2112, -0.16666654
        %v2114 = vmul.f32 %v2109, %v2113
        %v2115 = vadd.f32 %v2114, 1.0
        %v2116 = vmul.f32 %v2115, %v2100
        %vm2117 = vweird.f32 %v1818
        %v2118 = vadd.s32 %v2101, 3
        %v2119 = vand.u32 %v2118, 3
        %vm2120 = vcmp.lt.s32.totalorder %v2119, 2
        %vm2121 = vcmp.eq.s32.totalorder %v2119, 0
        %v2122 = vxor.u32 %v2116, 2147483648
        %v2123 = vsel %vm2121, %v2108, %v2122
        %vm2124 = vcmp.eq.s32.totalorder %v2119, 2
        %v2125 = vxor.u32 %v2108, 2147483648
        %v2126 = vsel %vm2124, %v2125, %v2116
        %v2127 = vsel %vm2120, %v2123, %v2126
        %v2128 = vsel %vm2117, nan, %v2127
        %s2129 = scalar_lea.vmem %s178, 80 [#allocation7]
        %2130 = vst [vmem:[%s2129] sm:$0xff] %v1973
        %2131 = vst [vmem:[%s2129 + $0x8] sm:$0xff] %v2128
        %s2132 = sadd.s32 %s200, 7
        %s2133 = scvt.s32.f32 %s2132
        %v2134 = vstv %s2133
        %v2135 = vmul.f32 %v2134, %v199
        %v2137 = vperm.slane %v2135, 0
        %v2139 = vadd.f32 %v2137, %v197
        %v2140 = vadd.f32 %v2137, %v198
        %v2141 = vand.u32 2147483647, %v2139
        %vm2142 = vcmp.le.f32.partialorder %v2141, 0.7853982
        %vm2143 = vcmp.lt.s32.totalorder %v2139, 0
        %v2144 = vand.u32 %v2139, 2139095040
        %v2145 = vshrl.u32 %v2144, 23
        %v2146 = vsub.s32 %v2145, 127
        %v2147 = vand.u32 2147483647, %v2139
        %v2148 = vand.u32 %v2147, 8388607
        %v2149 = vor.u32 %v2148, 8388608
        %v2150 = vsub.s32 0, %v2149
        %v2151 = vadd.s32 %v2146, 1
        %vm2152 = vcmp.gt.s32.totalorder %v2151, 0
        %v2153 = vsel %vm2152, %v2151, 0
        %v2154 = vshrl.u32 %v2153, 5
        %v2155 = vand.u32 %v2153, 31
        %v2156 = vsub.s32 32, %v2155
        %v2157 = vshrl.u32 683565275, %v2156
        %v2158 = vshll.u32 683565275, %v2155
        %v2159 = vshrl.u32 2475754826, %v2156
        %v2160 = vor.u32 %v2158, %v2159
        %v2161 = vshll.u32 2475754826, %v2155
        %v2162 = vshrl.u32 2131351028, %v2156
        %v2163 = vor.u32 %v2161, %v2162
        %v2164 = vshll.u32 2131351028, %v2155
        %v2165 = vshrl.u32 2102212464, %v2156
        %v2166 = vor.u32 %v2164, %v2165
        %v2167 = vshll.u32 2102212464, %v2155
        %v2168 = vshrl.u32 920167782, %v2156
        %v2169 = vor.u32 %v2167, %v2168
        %v2170 = vshll.u32 920167782, %v2155
        %v2171 = vshrl.u32 1326507024, %v2156
        %v2172 = vor.u32 %v2170, %v2171
        %vm2173 = vcmp.lt.s32.totalorder %v2154, 1
        %vm2174 = vcmp.lt.s32.totalorder %v2154, 2
        %vm2175 = vcmp.lt.s32.totalorder %v2154, 3
        %vm2176 = vcmp.lt.s32.totalorder %v2154, 4
        %v2177 = vsel %vm2173, %v2157, %v2160
        %v2178 = vsel %vm2176, %v2166, 2102212464
        %v2179 = vsel %vm2175, %v2163, %v2178
        %v2180 = vsel %vm2174, %v2177, %v2179
        %v2181 = vsel %vm2173, %v2160, %v2163
        %v2182 = vsel %vm2176, %v2169, 920167782
        %v2183 = vsel %vm2175, %v2166, %v2182
        %v2184 = vsel %vm2174, %v2181, %v2183
        %v2185 = vsel %vm2173, %v2163, %v2166
        %v2186 = vsel %vm2176, %v2172, 1326507024
        %v2187 = vsel %vm2175, %v2169, %v2186
        %v2188 = vsel %vm2174, %v2185, %v2187
        %v2189 = vshll.u32 %v2149, 8
        %v2190 = vand.u32 %v2189, 65535
        %v2191 = vshrl.u32 %v2189, 16
        %v2192 = vand.u32 %v2188, 65535
        %v2193 = vshrl.u32 %v2188, 16
        %v2194 = vmul.u32 %v2190, %v2192
        %v2195 = vmul.u32 %v2190, %v2193
        %v2196 = vmul.u32 %v2191, %v2192
        %v2197 = vmul.u32 %v2191, %v2193
        %v2198 = vshll.u32 %v2195, 16
        %v2199 = vshrl.u32 %v2195, 16
        %v2200 = vshll.u32 %v2196, 16
        %v2201 = vshrl.u32 %v2196, 16
        %vm2202 = vc.u32 %v2194, %v2198
        %v2203 = vsel %vm2202, 1, 0
        %v2204 = vadd.s32 %v2194, %v2198
        %v2205 = vadd.s32 %v2197, %v2203
        %vm2206 = vc.u32 %v2204, %v2200
        %v2207 = vsel %vm2206, 1, 0
        %v2208 = vadd.s32 %v2204, %v2200
        %v2209 = vadd.s32 %v2205, %v2207
        %v2210 = vadd.s32 %v2209, %v2199
        %v2211 = vadd.s32 %v2210, %v2201
        %v2212 = vand.u32 %v2189, 65535
        %v2213 = vshrl.u32 %v2189, 16
        %v2214 = vand.u32 %v2184, 65535
        %v2215 = vshrl.u32 %v2184, 16
        %v2216 = vmul.u32 %v2212, %v2214
        %v2217 = vmul.u32 %v2212, %v2215
        %v2218 = vmul.u32 %v2213, %v2214
        %v2219 = vmul.u32 %v2213, %v2215
        %v2220 = vshll.u32 %v2217, 16
        %v2221 = vshrl.u32 %v2217, 16
        %v2222 = vshll.u32 %v2218, 16
        %v2223 = vshrl.u32 %v2218, 16
        %vm2224 = vc.u32 %v2216, %v2220
        %v2225 = vsel %vm2224, 1, 0
        %v2226 = vadd.s32 %v2216, %v2220
        %v2227 = vadd.s32 %v2219, %v2225
        %vm2228 = vc.u32 %v2226, %v2222
        %v2229 = vsel %vm2228, 1, 0
        %v2230 = vadd.s32 %v2226, %v2222
        %v2231 = vadd.s32 %v2227, %v2229
        %v2232 = vadd.s32 %v2231, %v2221
        %v2233 = vadd.s32 %v2232, %v2223
        %v2234 = vmul.u32 %v2189, %v2180
        %v2235 = vadd.s32 %v2211, %v2230
        %vm2236 = vc.u32 %v2211, %v2230
        %v2237 = vadd.s32 %v2233, 1
        %v2238 = vsel %vm2236, %v2237, %v2233
        %v2239 = vadd.s32 %v2234, %v2238
        %v2240 = vadd.s32 %v2239, 536870912
        %v2241 = vshrl.u32 %v2240, 30
        %v2242 = vshll.u32 %v2241, 30
        %v2243 = vsub.s32 %v2239, %v2242
        %vm2244 = vcmp.lt.s32.totalorder %v2243, 0
        %v2245 = vsub.s32 0, %v2243
        %v2246 = vsel %vm2244, %v2245, %v2243
        %v2247 = vclz %v2246
        %v2248 = vsub.s32 %v2247, 2
        %vm2249 = vcmp.gt.s32.totalorder 0, %v2248
        %v2250 = vsel %vm2249, 0, %v2248
        %v2251 = vsub.s32 32, %v2250
        %v2252 = vshll.u32 %v2243, %v2250
        %v2253 = vshrl.u32 %v2235, %v2251
        %v2254 = vor.u32 %v2252, %v2253
        %v2255 = vsub.s32 4294967266, %v2250
        %v2256 = vadd.s32 %v2255, 127
        %v2257 = vshll.u32 %v2256, 23
        %v2258 = vor.u32 4788187, %v2257
        %v2259 = vand.u32 2147483647, %v2258
        %v2261 = vcvt.s32.f32 %v2254
        %v2262 = vmul.f32 %v2261, %v2259
        %v2263 = vxor.u32 %v2262, 2147483648
        %v2264 = vsel %vm2143, %v2263, %v2262
        %v2265 = vsub.s32 4, %v2241
        %v2266 = vsel %vm2143, %v2265, %v2241
        %v2267 = vsel %vm2142, %v2139, %v2264
        %v2268 = vsel %vm2142, 0, %v2266
        %v2269 = vmul.f32 %v2267, %v2267
        %v2270 = vmul.f32 %v2269, -0.001358992
        %v2271 = vadd.f32 %v2270, 0.041655596
        %v2272 = vmul.f32 %v2269, %v2271
        %v2273 = vadd.f32 %v2272, -0.4999988
        %v2274 = vmul.f32 %v2269, %v2273
        %v2275 = vadd.f32 1.0, %v2274
        %v2276 = vmul.f32 %v2267, %v2267
        %v2277 = vmul.f32 %v2276, -0.00019511016
        %v2278 = vadd.f32 %v2277, 0.008332121
        %v2279 = vmul.f32 %v2276, %v2278
        %v2280 = vadd.f32 %v2279, -0.16666654
        %v2281 = vmul.f32 %v2276, %v2280
        %v2282 = vadd.f32 %v2281, 1.0
        %v2283 = vmul.f32 %v2282, %v2267
        %vm2284 = vweird.f32 %v2139
        %v2285 = vadd.s32 %v2268, 3
        %v2286 = vand.u32 %v2285, 3
        %vm2287 = vcmp.lt.s32.totalorder %v2286, 2
        %vm2288 = vcmp.eq.s32.totalorder %v2286, 0
        %v2289 = vxor.u32 %v2283, 2147483648
        %v2290 = vsel %vm2288, %v2275, %v2289
        %vm2291 = vcmp.eq.s32.totalorder %v2286, 2
        %v2292 = vxor.u32 %v2275, 2147483648
        %v2293 = vsel %vm2291, %v2292, %v2283
        %v2294 = vsel %vm2287, %v2290, %v2293
        %v2295 = vsel %vm2284, nan, %v2294
        %v2296 = vand.u32 2147483647, %v2140
        %vm2297 = vcmp.le.f32.partialorder %v2296, 0.7853982
        %vm2298 = vcmp.lt.s32.totalorder %v2140, 0
        %v2299 = vand.u32 %v2140, 2139095040
        %v2300 = vshrl.u32 %v2299, 23
        %v2301 = vsub.s32 %v2300, 127
        %v2302 = vand.u32 2147483647, %v2140
        %v2303 = vand.u32 %v2302, 8388607
        %v2304 = vor.u32 %v2303, 8388608
        %v2305 = vsub.s32 0, %v2304
        %v2306 = vadd.s32 %v2301, 1
        %vm2307 = vcmp.gt.s32.totalorder %v2306, 0
        %v2308 = vsel %vm2307, %v2306, 0
        %v2309 = vshrl.u32 %v2308, 5
        %v2310 = vand.u32 %v2308, 31
        %v2311 = vsub.s32 32, %v2310
        %v2312 = vshrl.u32 683565275, %v2311
        %v2313 = vshll.u32 683565275, %v2310
        %v2314 = vshrl.u32 2475754826, %v2311
        %v2315 = vor.u32 %v2313, %v2314
        %v2316 = vshll.u32 2475754826, %v2310
        %v2317 = vshrl.u32 2131351028, %v2311
        %v2318 = vor.u32 %v2316, %v2317
        %v2319 = vshll.u32 2131351028, %v2310
        %v2320 = vshrl.u32 2102212464, %v2311
        %v2321 = vor.u32 %v2319, %v2320
        %v2322 = vshll.u32 2102212464, %v2310
        %v2323 = vshrl.u32 920167782, %v2311
        %v2324 = vor.u32 %v2322, %v2323
        %v2325 = vshll.u32 920167782, %v2310
        %v2326 = vshrl.u32 1326507024, %v2311
        %v2327 = vor.u32 %v2325, %v2326
        %vm2328 = vcmp.lt.s32.totalorder %v2309, 1
        %vm2329 = vcmp.lt.s32.totalorder %v2309, 2
        %vm2330 = vcmp.lt.s32.totalorder %v2309, 3
        %vm2331 = vcmp.lt.s32.totalorder %v2309, 4
        %v2332 = vsel %vm2328, %v2312, %v2315
        %v2333 = vsel %vm2331, %v2321, 2102212464
        %v2334 = vsel %vm2330, %v2318, %v2333
        %v2335 = vsel %vm2329, %v2332, %v2334
        %v2336 = vsel %vm2328, %v2315, %v2318
        %v2337 = vsel %vm2331, %v2324, 920167782
        %v2338 = vsel %vm2330, %v2321, %v2337
        %v2339 = vsel %vm2329, %v2336, %v2338
        %v2340 = vsel %vm2328, %v2318, %v2321
        %v2341 = vsel %vm2331, %v2327, 1326507024
        %v2342 = vsel %vm2330, %v2324, %v2341
        %v2343 = vsel %vm2329, %v2340, %v2342
        %v2344 = vshll.u32 %v2304, 8
        %v2345 = vand.u32 %v2344, 65535
        %v2346 = vshrl.u32 %v2344, 16
        %v2347 = vand.u32 %v2343, 65535
        %v2348 = vshrl.u32 %v2343, 16
        %v2349 = vmul.u32 %v2345, %v2347
        %v2350 = vmul.u32 %v2345, %v2348
        %v2351 = vmul.u32 %v2346, %v2347
        %v2352 = vmul.u32 %v2346, %v2348
        %v2353 = vshll.u32 %v2350, 16
        %v2354 = vshrl.u32 %v2350, 16
        %v2355 = vshll.u32 %v2351, 16
        %v2356 = vshrl.u32 %v2351, 16
        %vm2357 = vc.u32 %v2349, %v2353
        %v2358 = vsel %vm2357, 1, 0
        %v2359 = vadd.s32 %v2349, %v2353
        %v2360 = vadd.s32 %v2352, %v2358
        %vm2361 = vc.u32 %v2359, %v2355
        %v2362 = vsel %vm2361, 1, 0
        %v2363 = vadd.s32 %v2359, %v2355
        %v2364 = vadd.s32 %v2360, %v2362
        %v2365 = vadd.s32 %v2364, %v2354
        %v2366 = vadd.s32 %v2365, %v2356
        %v2367 = vand.u32 %v2344, 65535
        %v2368 = vshrl.u32 %v2344, 16
        %v2369 = vand.u32 %v2339, 65535
        %v2370 = vshrl.u32 %v2339, 16
        %v2371 = vmul.u32 %v2367, %v2369
        %v2372 = vmul.u32 %v2367, %v2370
        %v2373 = vmul.u32 %v2368, %v2369
        %v2374 = vmul.u32 %v2368, %v2370
        %v2375 = vshll.u32 %v2372, 16
        %v2376 = vshrl.u32 %v2372, 16
        %v2377 = vshll.u32 %v2373, 16
        %v2378 = vshrl.u32 %v2373, 16
        %vm2379 = vc.u32 %v2371, %v2375
        %v2380 = vsel %vm2379, 1, 0
        %v2381 = vadd.s32 %v2371, %v2375
        %v2382 = vadd.s32 %v2374, %v2380
        %vm2383 = vc.u32 %v2381, %v2377
        %v2384 = vsel %vm2383, 1, 0
        %v2385 = vadd.s32 %v2381, %v2377
        %v2386 = vadd.s32 %v2382, %v2384
        %v2387 = vadd.s32 %v2386, %v2376
        %v2388 = vadd.s32 %v2387, %v2378
        %v2389 = vmul.u32 %v2344, %v2335
        %v2390 = vadd.s32 %v2366, %v2385
        %vm2391 = vc.u32 %v2366, %v2385
        %v2392 = vadd.s32 %v2388, 1
        %v2393 = vsel %vm2391, %v2392, %v2388
        %v2394 = vadd.s32 %v2389, %v2393
        %v2395 = vadd.s32 %v2394, 536870912
        %v2396 = vshrl.u32 %v2395, 30
        %v2397 = vshll.u32 %v2396, 30
        %v2398 = vsub.s32 %v2394, %v2397
        %vm2399 = vcmp.lt.s32.totalorder %v2398, 0
        %v2400 = vsub.s32 0, %v2398
        %v2401 = vsel %vm2399, %v2400, %v2398
        %v2402 = vclz %v2401
        %v2403 = vsub.s32 %v2402, 2
        %vm2404 = vcmp.gt.s32.totalorder 0, %v2403
        %v2405 = vsel %vm2404, 0, %v2403
        %v2406 = vsub.s32 32, %v2405
        %v2407 = vshll.u32 %v2398, %v2405
        %v2408 = vshrl.u32 %v2390, %v2406
        %v2409 = vor.u32 %v2407, %v2408
        %v2410 = vsub.s32 4294967266, %v2405
        %v2411 = vadd.s32 %v2410, 127
        %v2412 = vshll.u32 %v2411, 23
        %v2413 = vor.u32 4788187, %v2412
        %v2414 = vand.u32 2147483647, %v2413
        %v2416 = vcvt.s32.f32 %v2409
        %v2417 = vmul.f32 %v2416, %v2414
        %v2418 = vxor.u32 %v2417, 2147483648
        %v2419 = vsel %vm2298, %v2418, %v2417
        %v2420 = vsub.s32 4, %v2396
        %v2421 = vsel %vm2298, %v2420, %v2396
        %v2422 = vsel %vm2297, %v2140, %v2419
        %v2423 = vsel %vm2297, 0, %v2421
        %v2424 = vmul.f32 %v2422, %v2422
        %v2425 = vmul.f32 %v2424, -0.001358992
        %v2426 = vadd.f32 %v2425, 0.041655596
        %v2427 = vmul.f32 %v2424, %v2426
        %v2428 = vadd.f32 %v2427, -0.4999988
        %v2429 = vmul.f32 %v2424, %v2428
        %v2430 = vadd.f32 1.0, %v2429
        %v2431 = vmul.f32 %v2422, %v2422
        %v2432 = vmul.f32 %v2431, -0.00019511016
        %v2433 = vadd.f32 %v2432, 0.008332121
        %v2434 = vmul.f32 %v2431, %v2433
        %v2435 = vadd.f32 %v2434, -0.16666654
        %v2436 = vmul.f32 %v2431, %v2435
        %v2437 = vadd.f32 %v2436, 1.0
        %v2438 = vmul.f32 %v2437, %v2422
        %vm2439 = vweird.f32 %v2140
        %v2440 = vadd.s32 %v2423, 3
        %v2441 = vand.u32 %v2440, 3
        %vm2442 = vcmp.lt.s32.totalorder %v2441, 2
        %vm2443 = vcmp.eq.s32.totalorder %v2441, 0
        %v2444 = vxor.u32 %v2438, 2147483648
        %v2445 = vsel %vm2443, %v2430, %v2444
        %vm2446 = vcmp.eq.s32.totalorder %v2441, 2
        %v2447 = vxor.u32 %v2430, 2147483648
        %v2448 = vsel %vm2446, %v2447, %v2438
        %v2449 = vsel %vm2442, %v2445, %v2448
        %v2450 = vsel %vm2439, nan, %v2449
        %s2451 = scalar_lea.vmem %s178, 96 [#allocation7]
        %2452 = vst [vmem:[%s2451] sm:$0xff] %v2295
        %2453 = vst [vmem:[%s2451 + $0x8] sm:$0xff] %v2450
        %s2454 = sadd.s32 %s200, 8
        %s2455 = scvt.s32.f32 %s2454
        %v2456 = vstv %s2455
        %v2457 = vmul.f32 %v2456, %v199
        %v2459 = vperm.slane %v2457, 0
        %v2461 = vadd.f32 %v2459, %v197
        %v2462 = vadd.f32 %v2459, %v198
        %v2463 = vand.u32 2147483647, %v2461
        %vm2464 = vcmp.le.f32.partialorder %v2463, 0.7853982
        %vm2465 = vcmp.lt.s32.totalorder %v2461, 0
        %v2466 = vand.u32 %v2461, 2139095040
        %v2467 = vshrl.u32 %v2466, 23
        %v2468 = vsub.s32 %v2467, 127
        %v2469 = vand.u32 2147483647, %v2461
        %v2470 = vand.u32 %v2469, 8388607
        %v2471 = vor.u32 %v2470, 8388608
        %v2472 = vsub.s32 0, %v2471
        %v2473 = vadd.s32 %v2468, 1
        %vm2474 = vcmp.gt.s32.totalorder %v2473, 0
        %v2475 = vsel %vm2474, %v2473, 0
        %v2476 = vshrl.u32 %v2475, 5
        %v2477 = vand.u32 %v2475, 31
        %v2478 = vsub.s32 32, %v2477
        %v2479 = vshrl.u32 683565275, %v2478
        %v2480 = vshll.u32 683565275, %v2477
        %v2481 = vshrl.u32 2475754826, %v2478
        %v2482 = vor.u32 %v2480, %v2481
        %v2483 = vshll.u32 2475754826, %v2477
        %v2484 = vshrl.u32 2131351028, %v2478
        %v2485 = vor.u32 %v2483, %v2484
        %v2486 = vshll.u32 2131351028, %v2477
        %v2487 = vshrl.u32 2102212464, %v2478
        %v2488 = vor.u32 %v2486, %v2487
        %v2489 = vshll.u32 2102212464, %v2477
        %v2490 = vshrl.u32 920167782, %v2478
        %v2491 = vor.u32 %v2489, %v2490
        %v2492 = vshll.u32 920167782, %v2477
        %v2493 = vshrl.u32 1326507024, %v2478
        %v2494 = vor.u32 %v2492, %v2493
        %vm2495 = vcmp.lt.s32.totalorder %v2476, 1
        %vm2496 = vcmp.lt.s32.totalorder %v2476, 2
        %vm2497 = vcmp.lt.s32.totalorder %v2476, 3
        %vm2498 = vcmp.lt.s32.totalorder %v2476, 4
        %v2499 = vsel %vm2495, %v2479, %v2482
        %v2500 = vsel %vm2498, %v2488, 2102212464
        %v2501 = vsel %vm2497, %v2485, %v2500
        %v2502 = vsel %vm2496, %v2499, %v2501
        %v2503 = vsel %vm2495, %v2482, %v2485
        %v2504 = vsel %vm2498, %v2491, 920167782
        %v2505 = vsel %vm2497, %v2488, %v2504
        %v2506 = vsel %vm2496, %v2503, %v2505
        %v2507 = vsel %vm2495, %v2485, %v2488
        %v2508 = vsel %vm2498, %v2494, 1326507024
        %v2509 = vsel %vm2497, %v2491, %v2508
        %v2510 = vsel %vm2496, %v2507, %v2509
        %v2511 = vshll.u32 %v2471, 8
        %v2512 = vand.u32 %v2511, 65535
        %v2513 = vshrl.u32 %v2511, 16
        %v2514 = vand.u32 %v2510, 65535
        %v2515 = vshrl.u32 %v2510, 16
        %v2516 = vmul.u32 %v2512, %v2514
        %v2517 = vmul.u32 %v2512, %v2515
        %v2518 = vmul.u32 %v2513, %v2514
        %v2519 = vmul.u32 %v2513, %v2515
        %v2520 = vshll.u32 %v2517, 16
        %v2521 = vshrl.u32 %v2517, 16
        %v2522 = vshll.u32 %v2518, 16
        %v2523 = vshrl.u32 %v2518, 16
        %vm2524 = vc.u32 %v2516, %v2520
        %v2525 = vsel %vm2524, 1, 0
        %v2526 = vadd.s32 %v2516, %v2520
        %v2527 = vadd.s32 %v2519, %v2525
        %vm2528 = vc.u32 %v2526, %v2522
        %v2529 = vsel %vm2528, 1, 0
        %v2530 = vadd.s32 %v2526, %v2522
        %v2531 = vadd.s32 %v2527, %v2529
        %v2532 = vadd.s32 %v2531, %v2521
        %v2533 = vadd.s32 %v2532, %v2523
        %v2534 = vand.u32 %v2511, 65535
        %v2535 = vshrl.u32 %v2511, 16
        %v2536 = vand.u32 %v2506, 65535
        %v2537 = vshrl.u32 %v2506, 16
        %v2538 = vmul.u32 %v2534, %v2536
        %v2539 = vmul.u32 %v2534, %v2537
        %v2540 = vmul.u32 %v2535, %v2536
        %v2541 = vmul.u32 %v2535, %v2537
        %v2542 = vshll.u32 %v2539, 16
        %v2543 = vshrl.u32 %v2539, 16
        %v2544 = vshll.u32 %v2540, 16
        %v2545 = vshrl.u32 %v2540, 16
        %vm2546 = vc.u32 %v2538, %v2542
        %v2547 = vsel %vm2546, 1, 0
        %v2548 = vadd.s32 %v2538, %v2542
        %v2549 = vadd.s32 %v2541, %v2547
        %vm2550 = vc.u32 %v2548, %v2544
        %v2551 = vsel %vm2550, 1, 0
        %v2552 = vadd.s32 %v2548, %v2544
        %v2553 = vadd.s32 %v2549, %v2551
        %v2554 = vadd.s32 %v2553, %v2543
        %v2555 = vadd.s32 %v2554, %v2545
        %v2556 = vmul.u32 %v2511, %v2502
        %v2557 = vadd.s32 %v2533, %v2552
        %vm2558 = vc.u32 %v2533, %v2552
        %v2559 = vadd.s32 %v2555, 1
        %v2560 = vsel %vm2558, %v2559, %v2555
        %v2561 = vadd.s32 %v2556, %v2560
        %v2562 = vadd.s32 %v2561, 536870912
        %v2563 = vshrl.u32 %v2562, 30
        %v2564 = vshll.u32 %v2563, 30
        %v2565 = vsub.s32 %v2561, %v2564
        %vm2566 = vcmp.lt.s32.totalorder %v2565, 0
        %v2567 = vsub.s32 0, %v2565
        %v2568 = vsel %vm2566, %v2567, %v2565
        %v2569 = vclz %v2568
        %v2570 = vsub.s32 %v2569, 2
        %vm2571 = vcmp.gt.s32.totalorder 0, %v2570
        %v2572 = vsel %vm2571, 0, %v2570
        %v2573 = vsub.s32 32, %v2572
        %v2574 = vshll.u32 %v2565, %v2572
        %v2575 = vshrl.u32 %v2557, %v2573
        %v2576 = vor.u32 %v2574, %v2575
        %v2577 = vsub.s32 4294967266, %v2572
        %v2578 = vadd.s32 %v2577, 127
        %v2579 = vshll.u32 %v2578, 23
        %v2580 = vor.u32 4788187, %v2579
        %v2581 = vand.u32 2147483647, %v2580
        %v2583 = vcvt.s32.f32 %v2576
        %v2584 = vmul.f32 %v2583, %v2581
        %v2585 = vxor.u32 %v2584, 2147483648
        %v2586 = vsel %vm2465, %v2585, %v2584
        %v2587 = vsub.s32 4, %v2563
        %v2588 = vsel %vm2465, %v2587, %v2563
        %v2589 = vsel %vm2464, %v2461, %v2586
        %v2590 = vsel %vm2464, 0, %v2588
        %v2591 = vmul.f32 %v2589, %v2589
        %v2592 = vmul.f32 %v2591, -0.001358992
        %v2593 = vadd.f32 %v2592, 0.041655596
        %v2594 = vmul.f32 %v2591, %v2593
        %v2595 = vadd.f32 %v2594, -0.4999988
        %v2596 = vmul.f32 %v2591, %v2595
        %v2597 = vadd.f32 1.0, %v2596
        %v2598 = vmul.f32 %v2589, %v2589
        %v2599 = vmul.f32 %v2598, -0.00019511016
        %v2600 = vadd.f32 %v2599, 0.008332121
        %v2601 = vmul.f32 %v2598, %v2600
        %v2602 = vadd.f32 %v2601, -0.16666654
        %v2603 = vmul.f32 %v2598, %v2602
        %v2604 = vadd.f32 %v2603, 1.0
        %v2605 = vmul.f32 %v2604, %v2589
        %vm2606 = vweird.f32 %v2461
        %v2607 = vadd.s32 %v2590, 3
        %v2608 = vand.u32 %v2607, 3
        %vm2609 = vcmp.lt.s32.totalorder %v2608, 2
        %vm2610 = vcmp.eq.s32.totalorder %v2608, 0
        %v2611 = vxor.u32 %v2605, 2147483648
        %v2612 = vsel %vm2610, %v2597, %v2611
        %vm2613 = vcmp.eq.s32.totalorder %v2608, 2
        %v2614 = vxor.u32 %v2597, 2147483648
        %v2615 = vsel %vm2613, %v2614, %v2605
        %v2616 = vsel %vm2609, %v2612, %v2615
        %v2617 = vsel %vm2606, nan, %v2616
        %v2618 = vand.u32 2147483647, %v2462
        %vm2619 = vcmp.le.f32.partialorder %v2618, 0.7853982
        %vm2620 = vcmp.lt.s32.totalorder %v2462, 0
        %v2621 = vand.u32 %v2462, 2139095040
        %v2622 = vshrl.u32 %v2621, 23
        %v2623 = vsub.s32 %v2622, 127
        %v2624 = vand.u32 2147483647, %v2462
        %v2625 = vand.u32 %v2624, 8388607
        %v2626 = vor.u32 %v2625, 8388608
        %v2627 = vsub.s32 0, %v2626
        %v2628 = vadd.s32 %v2623, 1
        %vm2629 = vcmp.gt.s32.totalorder %v2628, 0
        %v2630 = vsel %vm2629, %v2628, 0
        %v2631 = vshrl.u32 %v2630, 5
        %v2632 = vand.u32 %v2630, 31
        %v2633 = vsub.s32 32, %v2632
        %v2634 = vshrl.u32 683565275, %v2633
        %v2635 = vshll.u32 683565275, %v2632
        %v2636 = vshrl.u32 2475754826, %v2633
        %v2637 = vor.u32 %v2635, %v2636
        %v2638 = vshll.u32 2475754826, %v2632
        %v2639 = vshrl.u32 2131351028, %v2633
        %v2640 = vor.u32 %v2638, %v2639
        %v2641 = vshll.u32 2131351028, %v2632
        %v2642 = vshrl.u32 2102212464, %v2633
        %v2643 = vor.u32 %v2641, %v2642
        %v2644 = vshll.u32 2102212464, %v2632
        %v2645 = vshrl.u32 920167782, %v2633
        %v2646 = vor.u32 %v2644, %v2645
        %v2647 = vshll.u32 920167782, %v2632
        %v2648 = vshrl.u32 1326507024, %v2633
        %v2649 = vor.u32 %v2647, %v2648
        %vm2650 = vcmp.lt.s32.totalorder %v2631, 1
        %vm2651 = vcmp.lt.s32.totalorder %v2631, 2
        %vm2652 = vcmp.lt.s32.totalorder %v2631, 3
        %vm2653 = vcmp.lt.s32.totalorder %v2631, 4
        %v2654 = vsel %vm2650, %v2634, %v2637
        %v2655 = vsel %vm2653, %v2643, 2102212464
        %v2656 = vsel %vm2652, %v2640, %v2655
        %v2657 = vsel %vm2651, %v2654, %v2656
        %v2658 = vsel %vm2650, %v2637, %v2640
        %v2659 = vsel %vm2653, %v2646, 920167782
        %v2660 = vsel %vm2652, %v2643, %v2659
        %v2661 = vsel %vm2651, %v2658, %v2660
        %v2662 = vsel %vm2650, %v2640, %v2643
        %v2663 = vsel %vm2653, %v2649, 1326507024
        %v2664 = vsel %vm2652, %v2646, %v2663
        %v2665 = vsel %vm2651, %v2662, %v2664
        %v2666 = vshll.u32 %v2626, 8
        %v2667 = vand.u32 %v2666, 65535
        %v2668 = vshrl.u32 %v2666, 16
        %v2669 = vand.u32 %v2665, 65535
        %v2670 = vshrl.u32 %v2665, 16
        %v2671 = vmul.u32 %v2667, %v2669
        %v2672 = vmul.u32 %v2667, %v2670
        %v2673 = vmul.u32 %v2668, %v2669
        %v2674 = vmul.u32 %v2668, %v2670
        %v2675 = vshll.u32 %v2672, 16
        %v2676 = vshrl.u32 %v2672, 16
        %v2677 = vshll.u32 %v2673, 16
        %v2678 = vshrl.u32 %v2673, 16
        %vm2679 = vc.u32 %v2671, %v2675
        %v2680 = vsel %vm2679, 1, 0
        %v2681 = vadd.s32 %v2671, %v2675
        %v2682 = vadd.s32 %v2674, %v2680
        %vm2683 = vc.u32 %v2681, %v2677
        %v2684 = vsel %vm2683, 1, 0
        %v2685 = vadd.s32 %v2681, %v2677
        %v2686 = vadd.s32 %v2682, %v2684
        %v2687 = vadd.s32 %v2686, %v2676
        %v2688 = vadd.s32 %v2687, %v2678
        %v2689 = vand.u32 %v2666, 65535
        %v2690 = vshrl.u32 %v2666, 16
        %v2691 = vand.u32 %v2661, 65535
        %v2692 = vshrl.u32 %v2661, 16
        %v2693 = vmul.u32 %v2689, %v2691
        %v2694 = vmul.u32 %v2689, %v2692
        %v2695 = vmul.u32 %v2690, %v2691
        %v2696 = vmul.u32 %v2690, %v2692
        %v2697 = vshll.u32 %v2694, 16
        %v2698 = vshrl.u32 %v2694, 16
        %v2699 = vshll.u32 %v2695, 16
        %v2700 = vshrl.u32 %v2695, 16
        %vm2701 = vc.u32 %v2693, %v2697
        %v2702 = vsel %vm2701, 1, 0
        %v2703 = vadd.s32 %v2693, %v2697
        %v2704 = vadd.s32 %v2696, %v2702
        %vm2705 = vc.u32 %v2703, %v2699
        %v2706 = vsel %vm2705, 1, 0
        %v2707 = vadd.s32 %v2703, %v2699
        %v2708 = vadd.s32 %v2704, %v2706
        %v2709 = vadd.s32 %v2708, %v2698
        %v2710 = vadd.s32 %v2709, %v2700
        %v2711 = vmul.u32 %v2666, %v2657
        %v2712 = vadd.s32 %v2688, %v2707
        %vm2713 = vc.u32 %v2688, %v2707
        %v2714 = vadd.s32 %v2710, 1
        %v2715 = vsel %vm2713, %v2714, %v2710
        %v2716 = vadd.s32 %v2711, %v2715
        %v2717 = vadd.s32 %v2716, 536870912
        %v2718 = vshrl.u32 %v2717, 30
        %v2719 = vshll.u32 %v2718, 30
        %v2720 = vsub.s32 %v2716, %v2719
        %vm2721 = vcmp.lt.s32.totalorder %v2720, 0
        %v2722 = vsub.s32 0, %v2720
        %v2723 = vsel %vm2721, %v2722, %v2720
        %v2724 = vclz %v2723
        %v2725 = vsub.s32 %v2724, 2
        %vm2726 = vcmp.gt.s32.totalorder 0, %v2725
        %v2727 = vsel %vm2726, 0, %v2725
        %v2728 = vsub.s32 32, %v2727
        %v2729 = vshll.u32 %v2720, %v2727
        %v2730 = vshrl.u32 %v2712, %v2728
        %v2731 = vor.u32 %v2729, %v2730
        %v2732 = vsub.s32 4294967266, %v2727
        %v2733 = vadd.s32 %v2732, 127
        %v2734 = vshll.u32 %v2733, 23
        %v2735 = vor.u32 4788187, %v2734
        %v2736 = vand.u32 2147483647, %v2735
        %v2738 = vcvt.s32.f32 %v2731
        %v2739 = vmul.f32 %v2738, %v2736
        %v2740 = vxor.u32 %v2739, 2147483648
        %v2741 = vsel %vm2620, %v2740, %v2739
        %v2742 = vsub.s32 4, %v2718
        %v2743 = vsel %vm2620, %v2742, %v2718
        %v2744 = vsel %vm2619, %v2462, %v2741
        %v2745 = vsel %vm2619, 0, %v2743
        %v2746 = vmul.f32 %v2744, %v2744
        %v2747 = vmul.f32 %v2746, -0.001358992
        %v2748 = vadd.f32 %v2747, 0.041655596
        %v2749 = vmul.f32 %v2746, %v2748
        %v2750 = vadd.f32 %v2749, -0.4999988
        %v2751 = vmul.f32 %v2746, %v2750
        %v2752 = vadd.f32 1.0, %v2751
        %v2753 = vmul.f32 %v2744, %v2744
        %v2754 = vmul.f32 %v2753, -0.00019511016
        %v2755 = vadd.f32 %v2754, 0.008332121
        %v2756 = vmul.f32 %v2753, %v2755
        %v2757 = vadd.f32 %v2756, -0.16666654
        %v2758 = vmul.f32 %v2753, %v2757
        %v2759 = vadd.f32 %v2758, 1.0
        %v2760 = vmul.f32 %v2759, %v2744
        %vm2761 = vweird.f32 %v2462
        %v2762 = vadd.s32 %v2745, 3
        %v2763 = vand.u32 %v2762, 3
        %vm2764 = vcmp.lt.s32.totalorder %v2763, 2
        %vm2765 = vcmp.eq.s32.totalorder %v2763, 0
        %v2766 = vxor.u32 %v2760, 2147483648
        %v2767 = vsel %vm2765, %v2752, %v2766
        %vm2768 = vcmp.eq.s32.totalorder %v2763, 2
        %v2769 = vxor.u32 %v2752, 2147483648
        %v2770 = vsel %vm2768, %v2769, %v2760
        %v2771 = vsel %vm2764, %v2767, %v2770
        %v2772 = vsel %vm2761, nan, %v2771
        %s2773 = scalar_lea.vmem %s178, 112 [#allocation7]
        %2774 = vst [vmem:[%s2773] sm:$0xff] %v2617
        %2775 = vst [vmem:[%s2773 + $0x8] sm:$0xff] %v2772
        %s2776 = sand.u32 %s90, 1
        %s2777 = scalar_lea.sflag [#allocation4], %s2776
        %s2778 = sand.u32 %s90, 1
        %s2779 = smul.addr %s2778, 128
        %s2780 = scalar_lea.vmem [#allocation7], %s2779
        // Predicated region
        $region41: #{tpu_custom_call.1} parent=31 // pred_check
          %p2781 = pneg %p100
        $region42: #{tpu_custom_call.1} parent=31 // pred_check_branch
          %2783 = sbr.rel (%p2781) target = $region44
        $region43: #{tpu_custom_call.1} parent=31 // pred_region
          %s2784 = smul.u32 8, %s19
          %2786 = vsyncadd %s2777, 0
          %s2787 = smul.addr %s2784, 2
          %s2788 = smul.addr %s2787, 8
          %s2789 = scalar_lea.hbm %s3, %s2788
          %s2790 = sshll.u32 %s2780, 4
          %s2791 = int_to_ptr.vmem [resolvable:$true] %s2790
          %s2792 = sshll.u32 %s2789, 4
          %s2793 = int_to_ptr.hbm [resolvable:$true] %s2792
          %2798 = dma.vmem_to_hbm [thread:$0]  %s2791, 2048, %s2793, %s2777, 128, 128, 8
        $region44: #{tpu_custom_call.1} parent=31 // pred_fallthru
          _
      $region32: #{tpu_custom_call.1} parent=5 // pred_fallthru
        _
      %p2799 = scmp.le.s32.totalorder 2, %s14
      // Predicated region
      $region45: #{tpu_custom_call.1} parent=5 // pred_check
        %p2800 = pneg %p2799
      $region46: #{tpu_custom_call.1} parent=5 // pred_check_branch
        %2802 = sbr.rel (%p2800) target = $region48
      $region47: #{tpu_custom_call.1} parent=5 // pred_region
        %s2803 = ssub.s32 %s14, 2
        // Predicated region
        $region49: #{tpu_custom_call.1} parent=47 // pred_check
          %p2804 = pneg %p106
        $region50: #{tpu_custom_call.1} parent=47 // pred_check_branch
          %2806 = sbr.rel (%p2804) target = $region52
        $region51: #{tpu_custom_call.1} parent=47 // pred_region
          %s2807 = sand.u32 %s91, 1
          %s2808 = scalar_lea.sflag [#allocation4], %s2807
          %s2809 = sand.u32 %s91, 1
          %s2810 = smul.addr %s2809, 128
          %s2811 = scalar_lea.vmem [#allocation7], %s2810
          %2813 = dma.done %s2808, 2048
        $region52: #{tpu_custom_call.1} parent=47 // pred_fallthru
          _
      $region48: #{tpu_custom_call.1} parent=5 // pred_fallthru
        _
    $region6: #{tpu_custom_call.1} parent=1 // loop_footer
      %s18 = sadd.s32 1, %s14
    $region7: #{tpu_custom_call.1} parent=1 // loop_footer_branch
      %13 = sbr.rel target = $region3
    $region8: #{tpu_custom_call.1} parent=1 // loop_exit
      _
    %2814 = vsyncpa [#allocation3], 1
    %s2815 = scalar_lea.sflag [#allocation3], 1
    %2816 = vsyncpa %s2815, 1
    %2817 = vsyncpa [#allocation6], 1
    %2818 = vsyncpa [#allocation4], 1
    %s2819 = scalar_lea.sflag [#allocation4], 1
    %2820 = vsyncpa %s2819, 1

</llo_original>
